<compile_context>
chip_gen: v6e
topology: v6e:2x2x1
jax: 0.10.0
libtpu: 0.0.40
codegen_flags: <defaults>
</compile_context>

<pallas_src>
import functools
import math

import jax
import jax.numpy as jnp
from jax.experimental import pallas as pl
from jax.experimental.pallas import tpu as pltpu

LANE = 128      # TPU lane width (last dim)
SUBLANE = 8     # TPU sublane width (second-to-last dim)


def _round_up(n, m):
    return ((n + m - 1) // m) * m


# ----------------------------- Pallas kernel ------------------------------- #

def _make_fused_encoder_kernel(plan):
    """Fused, statically unrolled encoder kernel.

    Ref layout: (x_ref, bias_ref, *weight_refs, o_ref).
    `plan` is a static tuple of (mode, e, d_out) per block, where mode is one of
    "identity" / "proj_fused" / "proj_split", e is the padded expand width and
    d_out the padded output width.

    MXU operands use the weights' dtype (bf16 recommended); bias add, ReLU and
    the residual add stay in f32 (v5e's VPU has no bf16).
    """

    def kernel(x_ref, bias_ref, *args):
        o_ref = args[-1]
        wrefs = args[:-1]
        x = x_ref[...].astype(jnp.float32)           # running activation (f32)
        wi = 0
        for bi, (mode, e, d_out) in enumerate(plan):
            cdt = wrefs[wi].dtype                    # MXU operand dtype
            xc = x.astype(cdt)
            b1 = bias_ref[2 * bi:2 * bi + 1, :e]         # (1, e)   f32
            b2 = bias_ref[2 * bi + 1:2 * bi + 2, :d_out]  # (1, d_out) f32

            # fc1 + ReLU (f32 accumulate / elementwise)
            h = jnp.dot(xc, wrefs[wi][...], preferred_element_type=jnp.float32)
            h = jnp.maximum(h + b1, 0.0)
            # TODO(synk): dropout omitted (eval-mode forward -> identity).

            if mode == "proj_fused":
                # y + sc = [h, x] @ [W2; Ws]  (single K = e + d_in matmul),
                # shortcut bias already folded into b2 on the host.
                hx = jnp.concatenate([h.astype(cdt), xc], axis=-1)
                y = jnp.dot(hx, wrefs[wi + 1][...],
                            preferred_element_type=jnp.float32) + b2
                wi += 2
            elif mode == "proj_split":
                y = (jnp.dot(h.astype(cdt), wrefs[wi + 1][...],
                             preferred_element_type=jnp.float32)
                     + jnp.dot(xc, wrefs[wi + 2][...],
                               preferred_element_type=jnp.float32)
                     + b2)
                wi += 3
            else:  # identity shortcut
                x_sc = x
                if x.shape[-1] != d_out:
                    # Widen the (un-padded) input with zero lanes before adding.
                    x_sc = jnp.concatenate(
                        [x, jnp.zeros((x.shape[0], d_out - x.shape[-1]),
                                      jnp.float32)], axis=-1)
                y = (jnp.dot(h.astype(cdt), wrefs[wi + 1][...],
                             preferred_element_type=jnp.float32)
                     + b2 + x_sc)
                wi += 2

            x = jnp.maximum(y, 0.0)                  # residual add + ReLU

        o_ref[...] = x.astype(o_ref.dtype)

    return kernel


# ------------------------------- Wrapper ------------------------------------ #

def _choose_tb(B, tb_max=512):
    """Tall batch tiles (amortize ~0.35us/step) but >=2 grid steps when B allows
    so the 'parallel' axis keeps both v7x TensorCores busy."""
    if B <= 2 * SUBLANE:
        return _round_up(B, SUBLANE)
    return min(tb_max, _round_up(-(-B // 2), SUBLANE))


def residual_fc_encoder(x, packed, *, tb=None):
    """ResidualFCEncoder.forward as one fused pallas_call, tiled over batch."""
    B, fin = x.shape
    assert fin == packed["d_in"], "input feature width mismatch"
    plan = packed["plan"]
    weights = packed["weights"]
    biases = packed["biases"]
    d_out = packed["d_out"]

    if tb is None:
        tb = _choose_tb(B)
    tb = min(tb, _round_up(B, SUBLANE))
    Bp = _round_up(B, tb)
    if Bp != B:
        # Pad only the batch dim; features are consumed at their natural width.
        x = jnp.pad(x, ((0, Bp - B), (0, 0)))

    # Weights/biases have constant block index -> resident across the grid.
    def const_spec(a):
        return pl.BlockSpec(a.shape, lambda i: (0, 0))

    x_spec = pl.BlockSpec((tb, fin), lambda i: (i, 0))
    o_spec = pl.BlockSpec((tb, d_out), lambda i: (i, 0))
    w_specs = [const_spec(w) for w in weights]
    b_spec = const_spec(biases)

    # VMEM budget: resident params (double-buffered, conservatively) + x/o tiles.
    resident = sum(int(a.size) * a.dtype.itemsize for a in weights) * 2
    resident += int(biases.size) * biases.dtype.itemsize * 2
    tiles = 2 * tb * fin * 4 + 2 * tb * d_out * 4
    vmem_limit = min(max(32 << 20, int(1.5 * (resident + tiles)) + (4 << 20)),
                     100 << 20)

    out = pl.pallas_call(
        _make_fused_encoder_kernel(plan),
        out_shape=jax.ShapeDtypeStruct((Bp, d_out), jnp.float32),
        grid_spec=pltpu.PrefetchScalarGridSpec(
            num_scalar_prefetch=0,
            grid=(Bp // tb,),
            in_specs=[x_spec, b_spec] + w_specs,
            out_specs=o_spec,
        ),
        compiler_params=pltpu.CompilerParams(
            dimension_semantics=("parallel",),
            vmem_limit_bytes=vmem_limit,
        ),
    )(x, biases, *weights)

    return out[:B, :packed["out_feature"]]


# --------------------------- Parameter building ---------------------------- #

def _linear_init(key, fin, fout):
    """nn.Linear default init: U(-1/sqrt(fin), 1/sqrt(fin)); weight as (fin, fout)."""
    kw, kb = jax.random.split(key)
    bound = 1.0 / math.sqrt(fin)
    w = jax.random.uniform(kw, (fin, fout), jnp.float32, -bound, bound)
    b = jax.random.uniform(kb, (fout,), jnp.float32, -bound, bound)
    return w, b


def make_encoder_params(key, in_feature, out_feature, hidden_layer_list):
    """Unpadded per-block params, matching the PyTorch module's layer layout."""
    assert len(hidden_layer_list) % 3 == 1, "hidden_layer_list must be 3n + 1."
    dims = [in_feature] + list(hidden_layer_list) + [out_feature]
    raw = []
    for i in range(len(dims) // 3):
        fin, fexp, fout = dims[3 * i], dims[3 * i + 1], dims[3 * i + 2]
        key, k1, k2, k3 = jax.random.split(key, 4)
        w1, b1 = _linear_init(k1, fin, fexp)
        w2, b2 = _linear_init(k2, fexp, fout)
        if fin == fout:
            ws, bs = None, None                   # identity shortcut
        else:
            ws, bs = _linear_init(k3, fin, fout)  # projected shortcut
        raw.append((w1, b1, w2, b2, ws, bs))
    return raw


def pack_encoder_params(raw, in_feature, out_feature, compute_dtype=jnp.bfloat16):
    """Per-dimension zero padding, shortcut fusion and bias stacking.

    - Output (lane) dims are rounded up to 128; contraction dims match the
      incoming activation width (no global PxP pad).
    - Projected shortcuts with 128-aligned input width are fused: [W2; Ws].
    - Shortcut bias folded into fc2 bias; all biases stacked into one f32 array.
    - Weights cast to `compute_dtype` (bf16 recommended; f32 for exact checks).
    """
    # Chained activation widths: raw input width, then each block's padded output.
    d = [in_feature]
    for (_w1, _b1, w2, _b2, _ws, _bs) in raw:
        d.append(_round_up(w2.shape[1], LANE))

    weights, plan, bias_rows = [], [], []
    for i, (w1, b1, w2, b2, ws, bs) in enumerate(raw):
        d_in, d_out = d[i], d[i + 1]
        e = _round_up(w1.shape[1], LANE)

        w1p = jnp.zeros((d_in, e), jnp.float32).at[:w1.shape[0], :w1.shape[1]].set(w1)
        b1p = jnp.zeros((e,), jnp.float32).at[:b1.shape[0]].set(b1)
        w2p = jnp.zeros((e, d_out), jnp.float32).at[:w2.shape[0], :w2.shape[1]].set(w2)

        if ws is None:
            b2p = jnp.zeros((d_out,), jnp.float32).at[:b2.shape[0]].set(b2)
            weights += [w1p.astype(compute_dtype), w2p.astype(compute_dtype)]
            plan.append(("identity", e, d_out))
        else:
            b2f = b2 + bs                          # fold shortcut bias into fc2 bias
            b2p = jnp.zeros((d_out,), jnp.float32).at[:b2f.shape[0]].set(b2f)
            wsp = jnp.zeros((d_in, d_out), jnp.float32).at[:ws.shape[0], :ws.shape[1]].set(ws)
            if d_in % LANE == 0:
                w2ws = jnp.concatenate([w2p, wsp], axis=0)    # (e + d_in, d_out)
                weights += [w1p.astype(compute_dtype), w2ws.astype(compute_dtype)]
                plan.append(("proj_fused", e, d_out))
            else:
                weights += [w1p.astype(compute_dtype), w2p.astype(compute_dtype),
                            wsp.astype(compute_dtype)]
                plan.append(("proj_split", e, d_out))
        bias_rows += [b1p, b2p]

    pmax = max(b.shape[0] for b in bias_rows)
    biases = jnp.stack([jnp.zeros((pmax,), jnp.float32).at[:b.shape[0]].set(b)
                        for b in bias_rows])      # (2*n_blocks, pmax) f32

    return {"plan": tuple(plan), "weights": weights, "biases": biases,
            "d_in": in_feature, "d_out": d[-1], "out_feature": out_feature}


# ------------------------------- Reference --------------------------------- #

def residual_fc_encoder_ref(x, raw):
    out = x
    for (w1, b1, w2, b2, ws, bs) in raw:
        h = jnp.maximum(out @ w1 + b1, 0.0)
        y = h @ w2 + b2
        sc = out @ ws + bs if ws is not None else out
        out = jnp.maximum(y + sc, 0.0)
    return out


# ---------------------------------- Main ------------------------------------ #

if __name__ == "__main__":
    key = jax.random.PRNGKey(0)
    kx, kp = jax.random.split(key)

    batch = 256               # 2 batch tiles of 128 -> pipelining + v7x megacore sharding
    in_feature = 16
    out_feature = 32
    # length 7 = 3*2 + 1 -> full dims [16, 64, 48, 48, 40, 48, 48, 56, 32] -> 3 blocks:
    #   block 0: 16 -> (expand 64) -> 48   (projected shortcut, split small-K side dot)
    #   block 1: 48 -> (expand 40) -> 48   (identity shortcut, no Ws matmul)
    #   block 2: 48 -> (expand 56) -> 32   (projected shortcut, fused K=256 matmul)
    hidden_layer_list = [64, 48, 48, 40, 48, 48, 56]

    x = jax.random.normal(kx, (batch, in_feature), jnp.float32)
    raw = make_encoder_params(kp, in_feature, out_feature, hidden_layer_list)
    ref = residual_fc_encoder_ref(x, raw)

    # f32 MXU operands: exact-math check against the pure-JAX reference.
    packed_f32 = pack_encoder_params(raw, in_feature, out_feature, jnp.float32)
    fwd_f32 = jax.jit(functools.partial(residual_fc_encoder, packed=packed_f32))
    out_f32 = jax.block_until_ready(fwd_f32(x))
    assert out_f32.shape == (batch, out_feature)
    assert jnp.allclose(out_f32, ref, atol=1e-4, rtol=1e-4), "f32 mismatch vs reference"

    # bf16 MXU operands (the recommended fast path on v5e/v6e/v7x): f32
    # accumulation + f32 elementwise, so only operand rounding differs.
    packed_bf16 = pack_encoder_params(raw, in_feature, out_feature, jnp.bfloat16)
    fwd_bf16 = jax.jit(functools.partial(residual_fc_encoder, packed=packed_bf16))
    out_bf16 = jax.block_until_ready(fwd_bf16(x))
    assert out_bf16.shape == (batch, out_feature)
    assert jnp.allclose(out_bf16, ref, atol=5e-2, rtol=5e-2), "bf16 mismatch vs reference"

    print("KERNEL_OK")
</pallas_src>

<mosaic_0001>
module attributes {stable_mosaic.version = 11 : i64} {
  func.func @kernel(%arg0: i32, %arg1: memref<128x16xf32, #tpu.memory_space<vmem>>, %arg2: memref<6x128xf32, #tpu.memory_space<vmem>>, %arg3: memref<16x128xf32, #tpu.memory_space<vmem>>, %arg4: memref<128x128xf32, #tpu.memory_space<vmem>>, %arg5: memref<16x128xf32, #tpu.memory_space<vmem>>, %arg6: memref<128x128xf32, #tpu.memory_space<vmem>>, %arg7: memref<128x128xf32, #tpu.memory_space<vmem>>, %arg8: memref<128x128xf32, #tpu.memory_space<vmem>>, %arg9: memref<256x128xf32, #tpu.memory_space<vmem>>, %arg10: memref<128x128xf32, #tpu.memory_space<vmem>>) attributes {dimension_semantics = [#tpu.dimension_semantics<parallel>], iteration_bounds = array<i64: 2>, scalar_prefetch = 0 : i64, scratch_operands = 0 : i64, tpu.core_type = #tpu.core_type<tc>, window_params = [{transform_indices = @transform_0, window_bounds = array<i64: 128, 16>}, {pipeline_mode = #tpu.pipeline_mode<synchronous>, transform_indices = @transform_1, window_bounds = array<i64: 6, 128>}, {pipeline_mode = #tpu.pipeline_mode<synchronous>, transform_indices = @transform_2, window_bounds = array<i64: 16, 128>}, {pipeline_mode = #tpu.pipeline_mode<synchronous>, transform_indices = @transform_3, window_bounds = array<i64: 128, 128>}, {pipeline_mode = #tpu.pipeline_mode<synchronous>, transform_indices = @transform_4, window_bounds = array<i64: 16, 128>}, {pipeline_mode = #tpu.pipeline_mode<synchronous>, transform_indices = @transform_5, window_bounds = array<i64: 128, 128>}, {pipeline_mode = #tpu.pipeline_mode<synchronous>, transform_indices = @transform_6, window_bounds = array<i64: 128, 128>}, {pipeline_mode = #tpu.pipeline_mode<synchronous>, transform_indices = @transform_7, window_bounds = array<i64: 128, 128>}, {pipeline_mode = #tpu.pipeline_mode<synchronous>, transform_indices = @transform_8, window_bounds = array<i64: 256, 128>}, {transform_indices = @transform_9, window_bounds = array<i64: 128, 128>}]} {
    %c0 = arith.constant 0 : index
    %c0_0 = arith.constant 0 : index
    %0 = vector.load %arg1[%c0, %c0_0] : memref<128x16xf32, #tpu.memory_space<vmem>>, vector<128x16xf32>
    %c0_1 = arith.constant 0 : index
    %c0_2 = arith.constant 0 : index
    %1 = vector.load %arg2[%c0_1, %c0_2] : memref<6x128xf32, #tpu.memory_space<vmem>>, vector<1x128xf32>
    %c1 = arith.constant 1 : index
    %c0_3 = arith.constant 0 : index
    %2 = vector.load %arg2[%c1, %c0_3] : memref<6x128xf32, #tpu.memory_space<vmem>>, vector<1x128xf32>
    %c0_4 = arith.constant 0 : index
    %c0_5 = arith.constant 0 : index
    %3 = vector.load %arg3[%c0_4, %c0_5] : memref<16x128xf32, #tpu.memory_space<vmem>>, vector<16x128xf32>
    %cst = arith.constant dense<0.000000e+00> : vector<128x128xf32>
    %4 = tpu.matmul %0, %3, %cst {dimension_numbers = #tpu.dot_dimension_numbers<[1], [0], [0], [1], [0, 0, 1, 1], [], []>} : vector<128x16xf32>, vector<16x128xf32>, vector<128x128xf32> -> vector<128x128xf32>
    %5 = vector.broadcast %1 : vector<1x128xf32> to vector<128x128xf32>
    %6 = arith.addf %4, %5 : vector<128x128xf32>
    %cst_6 = arith.constant 0.000000e+00 : f32
    %7 = vector.broadcast %cst_6 : f32 to vector<128x128xf32>
    %8 = arith.maximumf %6, %7 : vector<128x128xf32>
    %c0_7 = arith.constant 0 : index
    %c0_8 = arith.constant 0 : index
    %9 = vector.load %arg4[%c0_7, %c0_8] : memref<128x128xf32, #tpu.memory_space<vmem>>, vector<128x128xf32>
    %cst_9 = arith.constant dense<0.000000e+00> : vector<128x128xf32>
    %10 = tpu.matmul %8, %9, %cst_9 {dimension_numbers = #tpu.dot_dimension_numbers<[1], [0], [0], [1], [0, 0, 1, 1], [], []>} : vector<128x128xf32>, vector<128x128xf32>, vector<128x128xf32> -> vector<128x128xf32>
    %c0_10 = arith.constant 0 : index
    %c0_11 = arith.constant 0 : index
    %11 = vector.load %arg5[%c0_10, %c0_11] : memref<16x128xf32, #tpu.memory_space<vmem>>, vector<16x128xf32>
    %cst_12 = arith.constant dense<0.000000e+00> : vector<128x128xf32>
    %12 = tpu.matmul %0, %11, %cst_12 {dimension_numbers = #tpu.dot_dimension_numbers<[1], [0], [0], [1], [0, 0, 1, 1], [], []>} : vector<128x16xf32>, vector<16x128xf32>, vector<128x128xf32> -> vector<128x128xf32>
    %13 = arith.addf %10, %12 : vector<128x128xf32>
    %14 = vector.broadcast %2 : vector<1x128xf32> to vector<128x128xf32>
    %15 = arith.addf %13, %14 : vector<128x128xf32>
    %cst_13 = arith.constant 0.000000e+00 : f32
    %16 = vector.broadcast %cst_13 : f32 to vector<128x128xf32>
    %17 = arith.maximumf %15, %16 : vector<128x128xf32>
    %c2 = arith.constant 2 : index
    %c0_14 = arith.constant 0 : index
    %18 = vector.load %arg2[%c2, %c0_14] : memref<6x128xf32, #tpu.memory_space<vmem>>, vector<1x128xf32>
    %c3 = arith.constant 3 : index
    %c0_15 = arith.constant 0 : index
    %19 = vector.load %arg2[%c3, %c0_15] : memref<6x128xf32, #tpu.memory_space<vmem>>, vector<1x128xf32>
    %c0_16 = arith.constant 0 : index
    %c0_17 = arith.constant 0 : index
    %20 = vector.load %arg6[%c0_16, %c0_17] : memref<128x128xf32, #tpu.memory_space<vmem>>, vector<128x128xf32>
    %cst_18 = arith.constant dense<0.000000e+00> : vector<128x128xf32>
    %21 = tpu.matmul %17, %20, %cst_18 {dimension_numbers = #tpu.dot_dimension_numbers<[1], [0], [0], [1], [0, 0, 1, 1], [], []>} : vector<128x128xf32>, vector<128x128xf32>, vector<128x128xf32> -> vector<128x128xf32>
    %22 = vector.broadcast %18 : vector<1x128xf32> to vector<128x128xf32>
    %23 = arith.addf %21, %22 : vector<128x128xf32>
    %cst_19 = arith.constant 0.000000e+00 : f32
    %24 = vector.broadcast %cst_19 : f32 to vector<128x128xf32>
    %25 = arith.maximumf %23, %24 : vector<128x128xf32>
    %c0_20 = arith.constant 0 : index
    %c0_21 = arith.constant 0 : index
    %26 = vector.load %arg7[%c0_20, %c0_21] : memref<128x128xf32, #tpu.memory_space<vmem>>, vector<128x128xf32>
    %cst_22 = arith.constant dense<0.000000e+00> : vector<128x128xf32>
    %27 = tpu.matmul %25, %26, %cst_22 {dimension_numbers = #tpu.dot_dimension_numbers<[1], [0], [0], [1], [0, 0, 1, 1], [], []>} : vector<128x128xf32>, vector<128x128xf32>, vector<128x128xf32> -> vector<128x128xf32>
    %28 = vector.broadcast %19 : vector<1x128xf32> to vector<128x128xf32>
    %29 = arith.addf %27, %28 : vector<128x128xf32>
    %30 = arith.addf %29, %17 : vector<128x128xf32>
    %cst_23 = arith.constant 0.000000e+00 : f32
    %31 = vector.broadcast %cst_23 : f32 to vector<128x128xf32>
    %32 = arith.maximumf %30, %31 : vector<128x128xf32>
    %c4 = arith.constant 4 : index
    %c0_24 = arith.constant 0 : index
    %33 = vector.load %arg2[%c4, %c0_24] : memref<6x128xf32, #tpu.memory_space<vmem>>, vector<1x128xf32>
    %c5 = arith.constant 5 : index
    %c0_25 = arith.constant 0 : index
    %34 = vector.load %arg2[%c5, %c0_25] : memref<6x128xf32, #tpu.memory_space<vmem>>, vector<1x128xf32>
    %c0_26 = arith.constant 0 : index
    %c0_27 = arith.constant 0 : index
    %35 = vector.load %arg8[%c0_26, %c0_27] : memref<128x128xf32, #tpu.memory_space<vmem>>, vector<128x128xf32>
    %cst_28 = arith.constant dense<0.000000e+00> : vector<128x128xf32>
    %36 = tpu.matmul %32, %35, %cst_28 {dimension_numbers = #tpu.dot_dimension_numbers<[1], [0], [0], [1], [0, 0, 1, 1], [], []>} : vector<128x128xf32>, vector<128x128xf32>, vector<128x128xf32> -> vector<128x128xf32>
    %37 = vector.broadcast %33 : vector<1x128xf32> to vector<128x128xf32>
    %38 = arith.addf %36, %37 : vector<128x128xf32>
    %cst_29 = arith.constant 0.000000e+00 : f32
    %39 = vector.broadcast %cst_29 : f32 to vector<128x128xf32>
    %40 = arith.maximumf %38, %39 : vector<128x128xf32>
    %41 = tpu.concatenate %40, %32 in 1 : vector<128x128xf32>, vector<128x128xf32> -> vector<128x256xf32>
    %c0_30 = arith.constant 0 : index
    %c0_31 = arith.constant 0 : index
    %42 = vector.load %arg9[%c0_30, %c0_31] : memref<256x128xf32, #tpu.memory_space<vmem>>, vector<256x128xf32>
    %cst_32 = arith.constant dense<0.000000e+00> : vector<128x128xf32>
    %43 = tpu.matmul %41, %42, %cst_32 {dimension_numbers = #tpu.dot_dimension_numbers<[1], [0], [0], [1], [0, 0, 1, 1], [], []>} : vector<128x256xf32>, vector<256x128xf32>, vector<128x128xf32> -> vector<128x128xf32>
    %44 = vector.broadcast %34 : vector<1x128xf32> to vector<128x128xf32>
    %45 = arith.addf %43, %44 : vector<128x128xf32>
    %cst_33 = arith.constant 0.000000e+00 : f32
    %46 = vector.broadcast %cst_33 : f32 to vector<128x128xf32>
    %47 = arith.maximumf %45, %46 : vector<128x128xf32>
    %c0_34 = arith.constant 0 : index
    %c0_35 = arith.constant 0 : index
    %48 = vector.load %arg10[%c0_34, %c0_35] : memref<128x128xf32, #tpu.memory_space<vmem>>, vector<128x128xf32>
    tpu.vector_store %arg10[%c0_34, %c0_35], %47 {strides = array<i32>} : memref<128x128xf32, #tpu.memory_space<vmem>>, vector<128x128xf32>,
    return
  }
  func.func @transform_0(%arg0: i32) -> (i32, i32) {
    %c0_i32 = arith.constant 0 : i32
    %c0_i32_0 = arith.constant 0 : i32
    return %arg0, %c0_i32 : i32, i32
  }
  func.func @transform_1(%arg0: i32) -> (i32, i32) {
    %c0_i32 = arith.constant 0 : i32
    %c0_i32_0 = arith.constant 0 : i32
    %c0_i32_1 = arith.constant 0 : i32
    return %c0_i32, %c0_i32_0 : i32, i32
  }
  func.func @transform_2(%arg0: i32) -> (i32, i32) {
    %c0_i32 = arith.constant 0 : i32
    %c0_i32_0 = arith.constant 0 : i32
    %c0_i32_1 = arith.constant 0 : i32
    return %c0_i32, %c0_i32_0 : i32, i32
  }
  func.func @transform_3(%arg0: i32) -> (i32, i32) {
    %c0_i32 = arith.constant 0 : i32
    %c0_i32_0 = arith.constant 0 : i32
    %c0_i32_1 = arith.constant 0 : i32
    return %c0_i32, %c0_i32_0 : i32, i32
  }
  func.func @transform_4(%arg0: i32) -> (i32, i32) {
    %c0_i32 = arith.constant 0 : i32
    %c0_i32_0 = arith.constant 0 : i32
    %c0_i32_1 = arith.constant 0 : i32
    return %c0_i32, %c0_i32_0 : i32, i32
  }
  func.func @transform_5(%arg0: i32) -> (i32, i32) {
    %c0_i32 = arith.constant 0 : i32
    %c0_i32_0 = arith.constant 0 : i32
    %c0_i32_1 = arith.constant 0 : i32
    return %c0_i32, %c0_i32_0 : i32, i32
  }
  func.func @transform_6(%arg0: i32) -> (i32, i32) {
    %c0_i32 = arith.constant 0 : i32
    %c0_i32_0 = arith.constant 0 : i32
    %c0_i32_1 = arith.constant 0 : i32
    return %c0_i32, %c0_i32_0 : i32, i32
  }
  func.func @transform_7(%arg0: i32) -> (i32, i32) {
    %c0_i32 = arith.constant 0 : i32
    %c0_i32_0 = arith.constant 0 : i32
    %c0_i32_1 = arith.constant 0 : i32
    return %c0_i32, %c0_i32_0 : i32, i32
  }
  func.func @transform_8(%arg0: i32) -> (i32, i32) {
    %c0_i32 = arith.constant 0 : i32
    %c0_i32_0 = arith.constant 0 : i32
    %c0_i32_1 = arith.constant 0 : i32
    return %c0_i32, %c0_i32_0 : i32, i32
  }
  func.func @transform_9(%arg0: i32) -> (i32, i32) {
    %c0_i32 = arith.constant 0 : i32
    %c0_i32_0 = arith.constant 0 : i32
    return %arg0, %c0_i32 : i32, i32
  }
}

</mosaic_0001>

<llo_original>
// kernel: residual_fc_encoder.1
$region0: #{residual_fc_encoder.1}
  #allocation0 [shape = 'u32[]', space=smem, size = 0x4, offset = 0x4, fixed_abs, tag = 'smem constant byte address 0x4 - core index']
  #allocation1 [shape = 'u32[144,128]{1,0:T(1,128)}', space=vmem, size = 0x12000, scoped, tag = 'internal scratch']
  %s0 = inlined_call_operand.vmem [shape: f32[256,16], index: 0, kind: input, shape index: {}]
  %s1 = inlined_call_operand.vmem [shape: f32[6,128], index: 1, kind: input, shape index: {}]
  %s2 = inlined_call_operand.vmem [shape: f32[16,128], index: 2, kind: input, shape index: {}]
  %s3 = inlined_call_operand.hbm [shape: f32[128,128], index: 3, kind: input, shape index: {}]
  %s4 = inlined_call_operand.vmem [shape: f32[16,128], index: 4, kind: input, shape index: {}]
  %s5 = inlined_call_operand.hbm [shape: f32[128,128], index: 5, kind: input, shape index: {}]
  %s6 = inlined_call_operand.hbm [shape: f32[128,128], index: 6, kind: input, shape index: {}]
  %s7 = inlined_call_operand.hbm [shape: f32[128,128], index: 7, kind: input, shape index: {}]
  %s8 = inlined_call_operand.vmem [shape: f32[256,128], index: 8, kind: input, shape index: {}]
  %s9 = inlined_call_operand.vmem [shape: f32[256,128], index: 9, kind: output, shape index: {}]
  %s10 = sld [smem:[#allocation0]]
  $region85: #{residual_fc_encoder.1} parent=0
    _
  %s12 = ssub.s32 1, %s10
  %s13 = scalar_select 0, %s12, %s10
  $region1: #{residual_fc_encoder.1} parent=0
    #allocation2 [shape = 'u8[65536]{0}', space=vmem, size = 0x10000, scoped, tag = 'input window, operand 3, single buffered']
    #allocation3 [shape = 's32[2]{0}', space=sflag, size = 0x8, scoped, tag = 'scoped memory for residual_fc_encoder.1']
    #allocation4 [shape = 'u8[65536]{0}', space=vmem, size = 0x10000, scoped, tag = 'input window, operand 5, single buffered']
    #allocation5 [shape = 's32[1]{0}', space=sflag, size = 0x4, scoped, tag = 'scoped memory for residual_fc_encoder.1']
    #allocation6 [shape = 'u8[65536]{0}', space=vmem, size = 0x10000, scoped, tag = 'input window, operand 6, single buffered']
    #allocation7 [shape = 'u8[65536]{0}', space=vmem, size = 0x10000, scoped, tag = 'input window, operand 7, single buffered']
    #allocation8 [shape = 's32[1]{0}', space=sflag, size = 0x4, scoped, tag = 'scoped memory for residual_fc_encoder.1']
    %14 = vsyncpa [#allocation3], 0
    %15 = vsyncpa [#allocation5], 0
    %16 = vsyncpa [#allocation8], 0
    loop: start=0, step=1, limit=4
    $region2: #{residual_fc_encoder.1} parent=1 // loop_pre_header
      _
    $region3: #{residual_fc_encoder.1} parent=1 // loop_header
      %s18 = sphi 0, %s22
      %p19 = scmp.ge.s32.totalorder %s18, 4
      %s28 = sphi 0, %s30
      %s31 = sphi 0, %s28
      %s32 = sphi 0, %s31
      %s48 = sphi 0, %s32
      %s52 = sphi 0, %s52
      %s54 = sphi 0, %s52
      %s55 = sphi 0, %s54
      %s69 = sphi 0, %s55
      %s73 = sphi 0, %s73
      %s75 = sphi 0, %s73
      %s76 = sphi 0, %s75
      %s90 = sphi 0, %s76
      %s94 = sphi 0, %s94
      %s96 = sphi 0, %s94
      %s97 = sphi 0, %s96
      %s111 = sphi 0, %s97
      %s115 = sphi 0, %s115
      %s117 = sphi 0, %s115
      %s118 = sphi 0, %s117
      %s132 = sphi 0, %s118
      %s136 = sphi 0, %s136
      %s138 = sphi 0, %s136
      %s139 = sphi 0, %s138
      %s153 = sphi 0, %s139
      %s157 = sphi 0, %s157
      %s159 = sphi 0, %s157
      %s160 = sphi 0, %s159
      %s174 = sphi 0, %s160
      %s178 = sphi 0, %s178
      %s180 = sphi 0, %s178
      %s181 = sphi 0, %s180
      %s195 = sphi 0, %s181
      %s199 = sphi 0, %s199
      %s201 = sphi 0, %s199
      %s202 = sphi 0, %s201
      %s216 = sphi 0, %s202
      %s222 = sphi 0, %s224
      %s225 = sphi 0, %s222
      %s226 = sphi 0, %s225
      %s242 = sphi 0, %s226
    $region4: #{residual_fc_encoder.1} parent=1 // loop_header_branch
      %21 = sbr.rel (%p19) target = $region8
    $region5: #{residual_fc_encoder.1} parent=1 // loop_body
      %s23 = ssub.s32 %s18, 1
      %s24 = ssub.s32 %s18, 2
      %s25 = sadd.s32 %s18, 1
      %s26 = ssub.s32 %s18, %s25
      %p27 = scmp.eq.s32.totalorder %s26, 0
      %s29 = sadd.s32 %s28, 1
      %s30 = scalar_select %p27, %s28, %s29
      %p33 = pneg %p27
      %p34 = scmp.eq.s32.totalorder %s18, 1
      %p35 = por %p33, %p34
      %p36 = scmp.ne.s32.totalorder %s28, %s31
      %p37 = scmp.eq.s32.totalorder %s18, 0
      %p38 = por %p36, %p37
      %p39 = scmp.ne.s32.totalorder %s28, %s31
      %p40 = scmp.eq.s32.totalorder %s23, 1
      %p41 = por %p39, %p40
      %p42 = scmp.ne.s32.totalorder %s31, %s32
      %p43 = scmp.eq.s32.totalorder %s23, 0
      %p44 = por %p42, %p43
      %p45 = scmp.ne.s32.totalorder %s31, %s32
      %p46 = scmp.eq.s32.totalorder %s24, 1
      %p47 = por %p45, %p46
      %p49 = scmp.ne.s32.totalorder %s32, %s48
      %p50 = scmp.eq.s32.totalorder %s24, 0
      %p51 = por %p49, %p50
      %s53 = sadd.s32 %s52, 1
      %p56 = scmp.eq.s32.totalorder %s18, 1
      %p57 = scmp.ne.s32.totalorder %s52, %s54
      %p58 = scmp.eq.s32.totalorder %s18, 0
      %p59 = por %p57, %p58
      %p60 = scmp.ne.s32.totalorder %s52, %s54
      %p61 = scmp.eq.s32.totalorder %s23, 1
      %p62 = por %p60, %p61
      %p63 = scmp.ne.s32.totalorder %s54, %s55
      %p64 = scmp.eq.s32.totalorder %s23, 0
      %p65 = por %p63, %p64
      %p66 = scmp.ne.s32.totalorder %s54, %s55
      %p67 = scmp.eq.s32.totalorder %s24, 1
      %p68 = por %p66, %p67
      %p70 = scmp.ne.s32.totalorder %s55, %s69
      %p71 = scmp.eq.s32.totalorder %s24, 0
      %p72 = por %p70, %p71
      %s74 = sadd.s32 %s73, 1
      %p77 = scmp.eq.s32.totalorder %s18, 1
      %p78 = scmp.ne.s32.totalorder %s73, %s75
      %p79 = scmp.eq.s32.totalorder %s18, 0
      %p80 = por %p78, %p79
      %p81 = scmp.ne.s32.totalorder %s73, %s75
      %p82 = scmp.eq.s32.totalorder %s23, 1
      %p83 = por %p81, %p82
      %p84 = scmp.ne.s32.totalorder %s75, %s76
      %p85 = scmp.eq.s32.totalorder %s23, 0
      %p86 = por %p84, %p85
      %p87 = scmp.ne.s32.totalorder %s75, %s76
      %p88 = scmp.eq.s32.totalorder %s24, 1
      %p89 = por %p87, %p88
      %p91 = scmp.ne.s32.totalorder %s76, %s90
      %p92 = scmp.eq.s32.totalorder %s24, 0
      %p93 = por %p91, %p92
      %s95 = sadd.s32 %s94, 1
      %p98 = scmp.eq.s32.totalorder %s18, 1
      %p99 = scmp.ne.s32.totalorder %s94, %s96
      %p100 = scmp.eq.s32.totalorder %s18, 0
      %p101 = por %p99, %p100
      %p102 = scmp.ne.s32.totalorder %s94, %s96
      %p103 = scmp.eq.s32.totalorder %s23, 1
      %p104 = por %p102, %p103
      %p105 = scmp.ne.s32.totalorder %s96, %s97
      %p106 = scmp.eq.s32.totalorder %s23, 0
      %p107 = por %p105, %p106
      %p108 = scmp.ne.s32.totalorder %s96, %s97
      %p109 = scmp.eq.s32.totalorder %s24, 1
      %p110 = por %p108, %p109
      %p112 = scmp.ne.s32.totalorder %s97, %s111
      %p113 = scmp.eq.s32.totalorder %s24, 0
      %p114 = por %p112, %p113
      %s116 = sadd.s32 %s115, 1
      %p119 = scmp.eq.s32.totalorder %s18, 1
      %p120 = scmp.ne.s32.totalorder %s115, %s117
      %p121 = scmp.eq.s32.totalorder %s18, 0
      %p122 = por %p120, %p121
      %p123 = scmp.ne.s32.totalorder %s115, %s117
      %p124 = scmp.eq.s32.totalorder %s23, 1
      %p125 = por %p123, %p124
      %p126 = scmp.ne.s32.totalorder %s117, %s118
      %p127 = scmp.eq.s32.totalorder %s23, 0
      %p128 = por %p126, %p127
      %p129 = scmp.ne.s32.totalorder %s117, %s118
      %p130 = scmp.eq.s32.totalorder %s24, 1
      %p131 = por %p129, %p130
      %p133 = scmp.ne.s32.totalorder %s118, %s132
      %p134 = scmp.eq.s32.totalorder %s24, 0
      %p135 = por %p133, %p134
      %s137 = sadd.s32 %s136, 1
      %p140 = scmp.eq.s32.totalorder %s18, 1
      %p141 = scmp.ne.s32.totalorder %s136, %s138
      %p142 = scmp.eq.s32.totalorder %s18, 0
      %p143 = por %p141, %p142
      %p144 = scmp.ne.s32.totalorder %s136, %s138
      %p145 = scmp.eq.s32.totalorder %s23, 1
      %p146 = por %p144, %p145
      %p147 = scmp.ne.s32.totalorder %s138, %s139
      %p148 = scmp.eq.s32.totalorder %s23, 0
      %p149 = por %p147, %p148
      %p150 = scmp.ne.s32.totalorder %s138, %s139
      %p151 = scmp.eq.s32.totalorder %s24, 1
      %p152 = por %p150, %p151
      %p154 = scmp.ne.s32.totalorder %s139, %s153
      %p155 = scmp.eq.s32.totalorder %s24, 0
      %p156 = por %p154, %p155
      %s158 = sadd.s32 %s157, 1
      %p161 = scmp.eq.s32.totalorder %s18, 1
      %p162 = scmp.ne.s32.totalorder %s157, %s159
      %p163 = scmp.eq.s32.totalorder %s18, 0
      %p164 = por %p162, %p163
      %p165 = scmp.ne.s32.totalorder %s157, %s159
      %p166 = scmp.eq.s32.totalorder %s23, 1
      %p167 = por %p165, %p166
      %p168 = scmp.ne.s32.totalorder %s159, %s160
      %p169 = scmp.eq.s32.totalorder %s23, 0
      %p170 = por %p168, %p169
      %p171 = scmp.ne.s32.totalorder %s159, %s160
      %p172 = scmp.eq.s32.totalorder %s24, 1
      %p173 = por %p171, %p172
      %p175 = scmp.ne.s32.totalorder %s160, %s174
      %p176 = scmp.eq.s32.totalorder %s24, 0
      %p177 = por %p175, %p176
      %s179 = sadd.s32 %s178, 1
      %p182 = scmp.eq.s32.totalorder %s18, 1
      %p183 = scmp.ne.s32.totalorder %s178, %s180
      %p184 = scmp.eq.s32.totalorder %s18, 0
      %p185 = por %p183, %p184
      %p186 = scmp.ne.s32.totalorder %s178, %s180
      %p187 = scmp.eq.s32.totalorder %s23, 1
      %p188 = por %p186, %p187
      %p189 = scmp.ne.s32.totalorder %s180, %s181
      %p190 = scmp.eq.s32.totalorder %s23, 0
      %p191 = por %p189, %p190
      %p192 = scmp.ne.s32.totalorder %s180, %s181
      %p193 = scmp.eq.s32.totalorder %s24, 1
      %p194 = por %p192, %p193
      %p196 = scmp.ne.s32.totalorder %s181, %s195
      %p197 = scmp.eq.s32.totalorder %s24, 0
      %p198 = por %p196, %p197
      %s200 = sadd.s32 %s199, 1
      %p203 = scmp.eq.s32.totalorder %s18, 1
      %p204 = scmp.ne.s32.totalorder %s199, %s201
      %p205 = scmp.eq.s32.totalorder %s18, 0
      %p206 = por %p204, %p205
      %p207 = scmp.ne.s32.totalorder %s199, %s201
      %p208 = scmp.eq.s32.totalorder %s23, 1
      %p209 = por %p207, %p208
      %p210 = scmp.ne.s32.totalorder %s201, %s202
      %p211 = scmp.eq.s32.totalorder %s23, 0
      %p212 = por %p210, %p211
      %p213 = scmp.ne.s32.totalorder %s201, %s202
      %p214 = scmp.eq.s32.totalorder %s24, 1
      %p215 = por %p213, %p214
      %p217 = scmp.ne.s32.totalorder %s202, %s216
      %p218 = scmp.eq.s32.totalorder %s24, 0
      %p219 = por %p217, %p218
      %s220 = ssub.s32 %s18, %s25
      %p221 = scmp.eq.s32.totalorder %s220, 0
      %s223 = sadd.s32 %s222, 1
      %s224 = scalar_select %p221, %s222, %s223
      %p227 = pneg %p221
      %p228 = scmp.eq.s32.totalorder %s18, 1
      %p229 = por %p227, %p228
      %p230 = scmp.ne.s32.totalorder %s222, %s225
      %p231 = scmp.eq.s32.totalorder %s18, 0
      %p232 = por %p230, %p231
      %p233 = scmp.ne.s32.totalorder %s222, %s225
      %p234 = scmp.eq.s32.totalorder %s23, 1
      %p235 = por %p233, %p234
      %p236 = scmp.ne.s32.totalorder %s225, %s226
      %p237 = scmp.eq.s32.totalorder %s23, 0
      %p238 = por %p236, %p237
      %p239 = scmp.ne.s32.totalorder %s225, %s226
      %p240 = scmp.eq.s32.totalorder %s24, 1
      %p241 = por %p239, %p240
      %p243 = scmp.ne.s32.totalorder %s226, %s242
      %p244 = scmp.eq.s32.totalorder %s24, 0
      %p245 = por %p243, %p244
      %p246 = scmp.le.s32.totalorder 1, %s18
      %p247 = scmp.lt.s32.totalorder %s18, 3
      %p248 = pnand %p246, %p247
      %p249 = pneg %p248
      // Predicated region
      $region9: #{residual_fc_encoder.1} parent=5 // pred_check
        _
      $region10: #{residual_fc_encoder.1} parent=5 // pred_check_branch
        %251 = sbr.rel (%p248) target = $region12
      $region11: #{residual_fc_encoder.1} parent=5 // pred_region
        %s252 = ssub.s32 %s18, 1
        // Predicated region
        $region13: #{residual_fc_encoder.1} parent=11 // pred_check
          %p253 = pneg %p65
        $region14: #{residual_fc_encoder.1} parent=11 // pred_check_branch
          %255 = sbr.rel (%p253) target = $region16
        $region15: #{residual_fc_encoder.1} parent=11 // pred_region
          _
        $region16: #{residual_fc_encoder.1} parent=11 // pred_fallthru
          _
        // Predicated region
        $region17: #{residual_fc_encoder.1} parent=11 // pred_check
          %p256 = pneg %p86
        $region18: #{residual_fc_encoder.1} parent=11 // pred_check_branch
          %258 = sbr.rel (%p256) target = $region20
        $region19: #{residual_fc_encoder.1} parent=11 // pred_region
          _
        $region20: #{residual_fc_encoder.1} parent=11 // pred_fallthru
          _
        // Predicated region
        $region21: #{residual_fc_encoder.1} parent=11 // pred_check
          %p259 = pneg %p107
        $region22: #{residual_fc_encoder.1} parent=11 // pred_check_branch
          %261 = sbr.rel (%p259) target = $region24
        $region23: #{residual_fc_encoder.1} parent=11 // pred_region
          %s263 = ssub.s32 2048, 2048
          %264 = vsyncadd [#allocation3], %s263
          %s265 = sshll.u32 [#allocation2], 4
          %s266 = int_to_ptr.vmem [resolvable:$true] %s265
          %271 = dma.hbm_to_vmem [thread:$0]  %s3, 2048, %s266, [#allocation3], 128, 128, 8
        $region24: #{residual_fc_encoder.1} parent=11 // pred_fallthru
          _
        // Predicated region
        $region25: #{residual_fc_encoder.1} parent=11 // pred_check
          %p272 = pneg %p128
        $region26: #{residual_fc_encoder.1} parent=11 // pred_check_branch
          %274 = sbr.rel (%p272) target = $region28
        $region27: #{residual_fc_encoder.1} parent=11 // pred_region
          _
        $region28: #{residual_fc_encoder.1} parent=11 // pred_fallthru
          _
        // Predicated region
        $region29: #{residual_fc_encoder.1} parent=11 // pred_check
          %p275 = pneg %p149
        $region30: #{residual_fc_encoder.1} parent=11 // pred_check_branch
          %277 = sbr.rel (%p275) target = $region32
        $region31: #{residual_fc_encoder.1} parent=11 // pred_region
          %s279 = ssub.s32 2048, 2048
          %280 = vsyncadd [#allocation5], %s279
          %s281 = sshll.u32 [#allocation4], 4
          %s282 = int_to_ptr.vmem [resolvable:$true] %s281
          %287 = dma.hbm_to_vmem [thread:$0]  %s5, 2048, %s282, [#allocation5], 128, 128, 8
        $region32: #{residual_fc_encoder.1} parent=11 // pred_fallthru
          _
        // Predicated region
        $region33: #{residual_fc_encoder.1} parent=11 // pred_check
          %p288 = pneg %p170
        $region34: #{residual_fc_encoder.1} parent=11 // pred_check_branch
          %290 = sbr.rel (%p288) target = $region36
        $region35: #{residual_fc_encoder.1} parent=11 // pred_region
          %s292 = ssub.s32 2048, 2048
          %293 = vsyncadd [#allocation5], %s292
          %s294 = sshll.u32 [#allocation6], 4
          %s295 = int_to_ptr.vmem [resolvable:$true] %s294
          %300 = dma.hbm_to_vmem [thread:$0]  %s6, 2048, %s295, [#allocation5], 128, 128, 8
        $region36: #{residual_fc_encoder.1} parent=11 // pred_fallthru
          _
        // Predicated region
        $region37: #{residual_fc_encoder.1} parent=11 // pred_check
          %p301 = pneg %p191
        $region38: #{residual_fc_encoder.1} parent=11 // pred_check_branch
          %303 = sbr.rel (%p301) target = $region40
        $region39: #{residual_fc_encoder.1} parent=11 // pred_region
          %s305 = ssub.s32 2048, 2048
          %306 = vsyncadd [#allocation8], %s305
          %s307 = sshll.u32 [#allocation7], 4
          %s308 = int_to_ptr.vmem [resolvable:$true] %s307
          %313 = dma.hbm_to_vmem [thread:$0]  %s7, 2048, %s308, [#allocation8], 128, 128, 8
        $region40: #{residual_fc_encoder.1} parent=11 // pred_fallthru
          _
        // Predicated region
        $region41: #{residual_fc_encoder.1} parent=11 // pred_check
          %p314 = pneg %p212
        $region42: #{residual_fc_encoder.1} parent=11 // pred_check_branch
          %316 = sbr.rel (%p314) target = $region44
        $region43: #{residual_fc_encoder.1} parent=11 // pred_region
          _
        $region44: #{residual_fc_encoder.1} parent=11 // pred_fallthru
          _
      $region12: #{residual_fc_encoder.1} parent=5 // pred_fallthru
        _
      %p317 = scmp.lt.s32.totalorder %s18, 2
      // Predicated region
      $region45: #{residual_fc_encoder.1} parent=5 // pred_check
        %p318 = pneg %p317
      $region46: #{residual_fc_encoder.1} parent=5 // pred_check_branch
        %320 = sbr.rel (%p318) target = $region48
      $region47: #{residual_fc_encoder.1} parent=5 // pred_region
        // Predicated region
        $region49: #{residual_fc_encoder.1} parent=47 // pred_check
          %p321 = pneg %p38
        $region50: #{residual_fc_encoder.1} parent=47 // pred_check_branch
          %323 = sbr.rel (%p321) target = $region52
        $region51: #{residual_fc_encoder.1} parent=47 // pred_region
          %s324 = smul.u32 16, %s18
          %p325 = scmp.lt.s32.totalorder %s324, 31
          %s326 = scalar_select %p325, %s324, 31
          %s327 = smul.addr %s326, 8
          %s328 = scalar_lea.vmem %s0, %s327
          %s329 = smul.u32 16, %s18
        $region52: #{residual_fc_encoder.1} parent=47 // pred_fallthru
          _
      $region48: #{residual_fc_encoder.1} parent=5 // pred_fallthru
        _
      %p330 = scmp.le.s32.totalorder 1, %s18
      %p331 = scmp.lt.s32.totalorder %s18, 3
      %p332 = pnand %p330, %p331
      %p333 = pneg %p332
      // Predicated region
      $region53: #{residual_fc_encoder.1} parent=5 // pred_check
        _
      $region54: #{residual_fc_encoder.1} parent=5 // pred_check_branch
        %335 = sbr.rel (%p332) target = $region56
      $region55: #{residual_fc_encoder.1} parent=5 // pred_region
        %s336 = ssub.s32 %s18, 1
        // Predicated region
        $region57: #{residual_fc_encoder.1} parent=55 // pred_check
          %p337 = pneg %p107
        $region58: #{residual_fc_encoder.1} parent=55 // pred_check_branch
          %339 = sbr.rel (%p337) target = $region60
        $region59: #{residual_fc_encoder.1} parent=55 // pred_region
          %340 = dma.done [#allocation3], 2048
        $region60: #{residual_fc_encoder.1} parent=55 // pred_fallthru
          _
        // Predicated region
        $region61: #{residual_fc_encoder.1} parent=55 // pred_check
          %p341 = pneg %p149
        $region62: #{residual_fc_encoder.1} parent=55 // pred_check_branch
          %343 = sbr.rel (%p341) target = $region64
        $region63: #{residual_fc_encoder.1} parent=55 // pred_region
          %344 = dma.done [#allocation5], 2048
        $region64: #{residual_fc_encoder.1} parent=55 // pred_fallthru
          _
        // Predicated region
        $region65: #{residual_fc_encoder.1} parent=55 // pred_check
          %p345 = pneg %p170
        $region66: #{residual_fc_encoder.1} parent=55 // pred_check_branch
          %347 = sbr.rel (%p345) target = $region68
        $region67: #{residual_fc_encoder.1} parent=55 // pred_region
          %348 = dma.done [#allocation5], 2048
        $region68: #{residual_fc_encoder.1} parent=55 // pred_fallthru
          _
        // Predicated region
        $region69: #{residual_fc_encoder.1} parent=55 // pred_check
          %p349 = pneg %p191
        $region70: #{residual_fc_encoder.1} parent=55 // pred_check_branch
          %351 = sbr.rel (%p349) target = $region72
        $region71: #{residual_fc_encoder.1} parent=55 // pred_region
          %352 = dma.done [#allocation8], 2048
        $region72: #{residual_fc_encoder.1} parent=55 // pred_fallthru
          _
        %s353 = smul.u32 16, %s23
        %p354 = scmp.lt.s32.totalorder %s353, 31
        %s355 = scalar_select %p354, %s353, 31
        %s356 = smul.addr %s355, 8
        %s357 = scalar_lea.vmem %s0, %s356
        %p358 = pneg %p44
        %p359 = pneg %p41
        %p360 = pneg %p65
        %p361 = pneg %p62
        %p362 = pneg %p86
        %p363 = pneg %p83
        %p364 = pneg %p107
        %p365 = pneg %p104
        %p366 = pneg %p128
        %p367 = pneg %p125
        %p368 = pneg %p149
        %p369 = pneg %p146
        %p370 = pneg %p170
        %p371 = pneg %p167
        %p372 = pneg %p191
        %p373 = pneg %p188
        %p374 = pneg %p212
        %p375 = pneg %p209
        %p376 = pneg %p238
        %p377 = pneg %p235
        %s378 = smul.u32 16, %s23
        %p379 = scmp.lt.s32.totalorder %s378, 31
        %s380 = scalar_select %p379, %s378, 31
        %s381 = smul.addr %s380, 8
        %s382 = scalar_lea.vmem %s9, %s381
        %s383 = smul.u32 16, %s23
        %p384 = scmp.lt.s32.totalorder %s383, 31
        %s385 = scalar_select %p384, %s383, 31
        %s386 = smul.addr %s385, 8
        %s387 = scalar_lea.vmem %s0, %s386
        %s388 = smul.u32 16, %s23
        %s389 = smul.u32 16, %s23
        %p390 = scmp.lt.s32.totalorder %s389, 31
        %s391 = scalar_select %p390, %s389, 31
        %s392 = smul.addr %s391, 8
        %s393 = scalar_lea.vmem %s9, %s392
        %s394 = smul.u32 16, %s23
        %v395 = vld [vmem:[%s387] sm:$0xff]
        %v396 = vld [vmem:[%s387 + $0x8] sm:$0xff]
        %v397 = vld [vmem:[%s387 + $0x10] sm:$0xff]
        %v398 = vld [vmem:[%s387 + $0x18] sm:$0xff]
        %v399 = vld [vmem:[%s387 + $0x20] sm:$0xff]
        %v400 = vld [vmem:[%s387 + $0x28] sm:$0xff]
        %v401 = vld [vmem:[%s387 + $0x30] sm:$0xff]
        %v402 = vld [vmem:[%s387 + $0x38] sm:$0xff]
        %v403 = vld [vmem:[%s387 + $0x40] sm:$0xff]
        %v404 = vld [vmem:[%s387 + $0x48] sm:$0xff]
        %v405 = vld [vmem:[%s387 + $0x50] sm:$0xff]
        %v406 = vld [vmem:[%s387 + $0x58] sm:$0xff]
        %v407 = vld [vmem:[%s387 + $0x60] sm:$0xff]
        %v408 = vld [vmem:[%s387 + $0x68] sm:$0xff]
        %v409 = vld [vmem:[%s387 + $0x70] sm:$0xff]
        %v410 = vld [vmem:[%s387 + $0x78] sm:$0xff]
        %v411 = vld [vmem:[%s1] sm:$0x1]
        %v412 = vld [vmem:[%s1 + $0x1] sm:$0x1]
        %v413 = vld [vmem:[%s2] sm:$0xff]
        %v414 = vld [vmem:[%s2 + $0x8] sm:$0xff]
        %v415 = vlaneseq
        %v416 = vshrl.u32 %v415, 7
        %v417 = vsub.s32 0, %v416
        %v418 = vrot.slane %v411, %v417
        %vm419 = vcmask 130048
        %v421 = vsel %vm419, %v395, 0
        %v424 = vsel %vm419, %v396, 0
        %v427 = vsel %vm419, %v397, 0
        %v430 = vsel %vm419, %v398, 0
        %v433 = vsel %vm419, %v399, 0
        %v436 = vsel %vm419, %v400, 0
        %v439 = vsel %vm419, %v401, 0
        %v442 = vsel %vm419, %v402, 0
        %v445 = vsel %vm419, %v403, 0
        %v448 = vsel %vm419, %v404, 0
        %v451 = vsel %vm419, %v405, 0
        %v454 = vsel %vm419, %v406, 0
        %v457 = vsel %vm419, %v407, 0
        %v460 = vsel %vm419, %v408, 0
        %v463 = vsel %vm419, %v409, 0
        %v466 = vsel %vm419, %v410, 0
        %468 = vmatprep.subr.mxu0 0.0
        %469 = vmatpush1.msra.mxu0 0.0
        %470 = vmatprep.subr.mxu0 0.0
        %471 = vmatpush1.msra.mxu0 0.0
        %472 = vmatprep.subr.mxu0 0.0
        %473 = vmatpush1.msra.mxu0 0.0
        %474 = vmatprep.subr.mxu0 0.0
        %475 = vmatpush1.msra.mxu0 0.0
        %476 = vmatprep.subr.mxu0 0.0
        %477 = vmatpush1.msra.mxu0 0.0
        %478 = vmatprep.subr.mxu0 0.0
        %479 = vmatpush1.msra.mxu0 0.0
        %480 = vmatprep.subr.mxu0 0.0
        %481 = vmatpush1.msra.mxu0 0.0
        %482 = vmatprep.subr.mxu0 0.0
        %483 = vmatpush1.msra.mxu0 0.0
        %484 = vmatprep.subr.mxu0 0.0
        %485 = vmatpush1.msra.mxu0 0.0
        %486 = vmatprep.subr.mxu0 0.0
        %487 = vmatpush1.msra.mxu0 0.0
        %488 = vmatprep.subr.mxu0 0.0
        %489 = vmatpush1.msra.mxu0 0.0
        %490 = vmatprep.subr.mxu0 0.0
        %491 = vmatpush1.msra.mxu0 0.0
        %492 = vmatprep.subr.mxu0 0.0
        %493 = vmatpush1.msra.mxu0 0.0
        %494 = vmatprep.subr.mxu0 0.0
        %495 = vmatpush1.msra.mxu0 0.0
        %496 = vmatprep.subr.mxu0 0.0
        %497 = vmatpush1.msra.mxu0 %v414
        %498 = vmatprep.subr.mxu0 0.0
        %499 = vmatpush1.msra.mxu0 %v413
        %500 = vmatprep.subr.mxu0 0.0
        %501 = vmatpush2.msra.mxu0 0.0
        %502 = vmatprep.subr.mxu0 0.0
        %503 = vmatpush2.msra.mxu0 0.0
        %504 = vmatprep.subr.mxu0 0.0
        %505 = vmatpush2.msra.mxu0 0.0
        %506 = vmatprep.subr.mxu0 0.0
        %507 = vmatpush2.msra.mxu0 0.0
        %508 = vmatprep.subr.mxu0 0.0
        %509 = vmatpush2.msra.mxu0 0.0
        %510 = vmatprep.subr.mxu0 0.0
        %511 = vmatpush2.msra.mxu0 0.0
        %512 = vmatprep.subr.mxu0 0.0
        %513 = vmatpush2.msra.mxu0 0.0
        %514 = vmatprep.subr.mxu0 0.0
        %515 = vmatpush2.msra.mxu0 0.0
        %516 = vmatprep.subr.mxu0 0.0
        %517 = vmatpush2.msra.mxu0 0.0
        %518 = vmatprep.subr.mxu0 0.0
        %519 = vmatpush2.msra.mxu0 0.0
        %520 = vmatprep.subr.mxu0 0.0
        %521 = vmatpush2.msra.mxu0 0.0
        %522 = vmatprep.subr.mxu0 0.0
        %523 = vmatpush2.msra.mxu0 0.0
        %524 = vmatprep.subr.mxu0 0.0
        %525 = vmatpush2.msra.mxu0 0.0
        %526 = vmatprep.subr.mxu0 0.0
        %527 = vmatpush2.msra.mxu0 0.0
        %528 = vmatprep.subr.mxu0 0.0
        %529 = vmatpush2.msra.mxu0 0.0
        %530 = vmatprep.subr.mxu0 0.0
        %531 = vmatpush2.msra.mxu0 0.0
        %532 = vmatprep.mubr.f32.mxu0 0.0
        %533 = vmatmul.mubr.f32.gmra.mxu0 %v421
        %v534 = vpop.f32.mrf.mxu0
        %v535 = vadd.f32 %v418, %v534
        %v536 = vpop.f32.mrf.mxu0
        %537 = vmatprep.mubr.f32.mxu0 0.0
        %538 = vmatmul.mubr.f32.gmra.mxu0 %v424
        %v539 = vpop.f32.mrf.mxu0
        %v540 = vadd.f32 %v418, %v539
        %v541 = vpop.f32.mrf.mxu0
        %542 = vmatprep.mubr.f32.mxu0 0.0
        %543 = vmatmul.mubr.f32.gmra.mxu0 %v427
        %v544 = vpop.f32.mrf.mxu0
        %v545 = vadd.f32 %v418, %v544
        %v546 = vpop.f32.mrf.mxu0
        %547 = vmatprep.mubr.f32.mxu0 0.0
        %548 = vmatmul.mubr.f32.gmra.mxu0 %v430
        %v549 = vpop.f32.mrf.mxu0
        %v550 = vadd.f32 %v418, %v549
        %v551 = vpop.f32.mrf.mxu0
        %552 = vmatprep.mubr.f32.mxu0 0.0
        %553 = vmatmul.mubr.f32.gmra.mxu0 %v433
        %v554 = vpop.f32.mrf.mxu0
        %v555 = vadd.f32 %v418, %v554
        %v556 = vpop.f32.mrf.mxu0
        %557 = vmatprep.mubr.f32.mxu0 0.0
        %558 = vmatmul.mubr.f32.gmra.mxu0 %v436
        %v559 = vpop.f32.mrf.mxu0
        %v560 = vadd.f32 %v418, %v559
        %v561 = vpop.f32.mrf.mxu0
        %562 = vmatprep.mubr.f32.mxu0 0.0
        %563 = vmatmul.mubr.f32.gmra.mxu0 %v439
        %v564 = vpop.f32.mrf.mxu0
        %v565 = vadd.f32 %v418, %v564
        %v566 = vpop.f32.mrf.mxu0
        %567 = vmatprep.mubr.f32.mxu0 0.0
        %568 = vmatmul.mubr.f32.gmra.mxu0 %v442
        %v569 = vpop.f32.mrf.mxu0
        %v570 = vadd.f32 %v418, %v569
        %v571 = vpop.f32.mrf.mxu0
        %572 = vmatprep.mubr.f32.mxu0 0.0
        %573 = vmatmul.mubr.f32.gmra.mxu0 %v445
        %v574 = vpop.f32.mrf.mxu0
        %v575 = vadd.f32 %v418, %v574
        %v576 = vpop.f32.mrf.mxu0
        %577 = vmatprep.mubr.f32.mxu0 0.0
        %578 = vmatmul.mubr.f32.gmra.mxu0 %v448
        %v579 = vpop.f32.mrf.mxu0
        %v580 = vadd.f32 %v418, %v579
        %v581 = vpop.f32.mrf.mxu0
        %582 = vmatprep.mubr.f32.mxu0 0.0
        %583 = vmatmul.mubr.f32.gmra.mxu0 %v451
        %v584 = vpop.f32.mrf.mxu0
        %v585 = vadd.f32 %v418, %v584
        %v586 = vpop.f32.mrf.mxu0
        %587 = vmatprep.mubr.f32.mxu0 0.0
        %588 = vmatmul.mubr.f32.gmra.mxu0 %v454
        %v589 = vpop.f32.mrf.mxu0
        %v590 = vadd.f32 %v418, %v589
        %v591 = vpop.f32.mrf.mxu0
        %592 = vmatprep.mubr.f32.mxu0 0.0
        %593 = vmatmul.mubr.f32.gmra.mxu0 %v457
        %v594 = vpop.f32.mrf.mxu0
        %v595 = vadd.f32 %v418, %v594
        %v596 = vpop.f32.mrf.mxu0
        %597 = vmatprep.mubr.f32.mxu0 0.0
        %598 = vmatmul.mubr.f32.gmra.mxu0 %v460
        %v599 = vpop.f32.mrf.mxu0
        %v600 = vadd.f32 %v418, %v599
        %v601 = vpop.f32.mrf.mxu0
        %602 = vmatprep.mubr.f32.mxu0 0.0
        %603 = vmatmul.mubr.f32.gmra.mxu0 %v463
        %v604 = vpop.f32.mrf.mxu0
        %v605 = vadd.f32 %v418, %v604
        %v606 = vpop.f32.mrf.mxu0
        %607 = vmatprep.mubr.f32.mxu0 0.0
        %608 = vmatmul.mubr.f32.gmra.mxu0 %v466
        %v609 = vpop.f32.mrf.mxu0
        %v610 = vadd.f32 %v418, %v609
        %v611 = vpop.f32.mrf.mxu0
        %612 = vdwg.mxu0
        %v613 = vmax.f32 %v535, 0.0
        %v614 = vmax.f32 %v540, 0.0
        %v615 = vmax.f32 %v545, 0.0
        %v616 = vmax.f32 %v550, 0.0
        %v617 = vmax.f32 %v555, 0.0
        %v618 = vmax.f32 %v560, 0.0
        %v619 = vmax.f32 %v565, 0.0
        %v620 = vmax.f32 %v570, 0.0
        %v621 = vmax.f32 %v575, 0.0
        %v622 = vmax.f32 %v580, 0.0
        %v623 = vmax.f32 %v585, 0.0
        %v624 = vmax.f32 %v590, 0.0
        %v625 = vmax.f32 %v595, 0.0
        %v626 = vmax.f32 %v600, 0.0
        %v627 = vmax.f32 %v605, 0.0
        %v628 = vmax.f32 %v610, 0.0
        %v629 = vld [vmem:[#allocation2] sm:$0xff]
        %v630 = vld [vmem:[#allocation2 + $0x8] sm:$0xff]
        %v631 = vld [vmem:[#allocation2 + $0x10] sm:$0xff]
        %v632 = vld [vmem:[#allocation2 + $0x18] sm:$0xff]
        %v633 = vld [vmem:[#allocation2 + $0x20] sm:$0xff]
        %v634 = vld [vmem:[#allocation2 + $0x28] sm:$0xff]
        %v635 = vld [vmem:[#allocation2 + $0x30] sm:$0xff]
        %v636 = vld [vmem:[#allocation2 + $0x38] sm:$0xff]
        %v637 = vld [vmem:[#allocation2 + $0x40] sm:$0xff]
        %v638 = vld [vmem:[#allocation2 + $0x48] sm:$0xff]
        %v639 = vld [vmem:[#allocation2 + $0x50] sm:$0xff]
        %v640 = vld [vmem:[#allocation2 + $0x58] sm:$0xff]
        %v641 = vld [vmem:[#allocation2 + $0x60] sm:$0xff]
        %v642 = vld [vmem:[#allocation2 + $0x68] sm:$0xff]
        %v643 = vld [vmem:[#allocation2 + $0x70] sm:$0xff]
        %v644 = vld [vmem:[#allocation2 + $0x78] sm:$0xff]
        %v645 = vld [vmem:[%s4] sm:$0xff]
        %v646 = vld [vmem:[%s4 + $0x8] sm:$0xff]
        %647 = vmatprep.subr.mxu0 0.0
        %648 = vmatpush1.msra.mxu0 0.0
        %649 = vmatprep.subr.mxu0 0.0
        %650 = vmatpush1.msra.mxu0 0.0
        %651 = vmatprep.subr.mxu0 0.0
        %652 = vmatpush1.msra.mxu0 0.0
        %653 = vmatprep.subr.mxu0 0.0
        %654 = vmatpush1.msra.mxu0 0.0
        %655 = vmatprep.subr.mxu0 0.0
        %656 = vmatpush1.msra.mxu0 0.0
        %657 = vmatprep.subr.mxu0 0.0
        %658 = vmatpush1.msra.mxu0 0.0
        %659 = vmatprep.subr.mxu0 0.0
        %660 = vmatpush1.msra.mxu0 0.0
        %661 = vmatprep.subr.mxu0 0.0
        %662 = vmatpush1.msra.mxu0 0.0
        %663 = vmatprep.subr.mxu0 0.0
        %664 = vmatpush1.msra.mxu0 0.0
        %665 = vmatprep.subr.mxu0 0.0
        %666 = vmatpush1.msra.mxu0 0.0
        %667 = vmatprep.subr.mxu0 0.0
        %668 = vmatpush1.msra.mxu0 0.0
        %669 = vmatprep.subr.mxu0 0.0
        %670 = vmatpush1.msra.mxu0 0.0
        %671 = vmatprep.subr.mxu0 0.0
        %672 = vmatpush1.msra.mxu0 0.0
        %673 = vmatprep.subr.mxu0 0.0
        %674 = vmatpush1.msra.mxu0 0.0
        %675 = vmatprep.subr.mxu0 0.0
        %676 = vmatpush1.msra.mxu0 %v646
        %677 = vmatprep.subr.mxu0 0.0
        %678 = vmatpush1.msra.mxu0 %v645
        %679 = vmatprep.subr.mxu0 0.0
        %680 = vmatpush2.msra.mxu0 0.0
        %681 = vmatprep.subr.mxu0 0.0
        %682 = vmatpush2.msra.mxu0 0.0
        %683 = vmatprep.subr.mxu0 0.0
        %684 = vmatpush2.msra.mxu0 0.0
        %685 = vmatprep.subr.mxu0 0.0
        %686 = vmatpush2.msra.mxu0 0.0
        %687 = vmatprep.subr.mxu0 0.0
        %688 = vmatpush2.msra.mxu0 0.0
        %689 = vmatprep.subr.mxu0 0.0
        %690 = vmatpush2.msra.mxu0 0.0
        %691 = vmatprep.subr.mxu0 0.0
        %692 = vmatpush2.msra.mxu0 0.0
        %693 = vmatprep.subr.mxu0 0.0
        %694 = vmatpush2.msra.mxu0 0.0
        %695 = vmatprep.subr.mxu0 0.0
        %696 = vmatpush2.msra.mxu0 0.0
        %697 = vmatprep.subr.mxu0 0.0
        %698 = vmatpush2.msra.mxu0 0.0
        %699 = vmatprep.subr.mxu0 0.0
        %700 = vmatpush2.msra.mxu0 0.0
        %701 = vmatprep.subr.mxu0 0.0
        %702 = vmatpush2.msra.mxu0 0.0
        %703 = vmatprep.subr.mxu0 0.0
        %704 = vmatpush2.msra.mxu0 0.0
        %705 = vmatprep.subr.mxu0 0.0
        %706 = vmatpush2.msra.mxu0 0.0
        %707 = vmatprep.subr.mxu0 0.0
        %708 = vmatpush2.msra.mxu0 0.0
        %709 = vmatprep.subr.mxu0 0.0
        %710 = vmatpush2.msra.mxu0 0.0
        %711 = vmatprep.mubr.f32.mxu0 0.0
        %712 = vmatmul.mubr.f32.gmra.mxu0 %v421
        %v713 = vpop.f32.mrf.mxu0
        %v714 = vadd.f32 0.0, %v713
        %v715 = vpop.f32.mrf.mxu0
        %716 = vmatprep.mubr.f32.mxu0 0.0
        %717 = vmatmul.mubr.f32.gmra.mxu0 %v424
        %v718 = vpop.f32.mrf.mxu0
        %v719 = vadd.f32 0.0, %v718
        %v720 = vpop.f32.mrf.mxu0
        %721 = vmatprep.mubr.f32.mxu0 0.0
        %722 = vmatmul.mubr.f32.gmra.mxu0 %v427
        %v723 = vpop.f32.mrf.mxu0
        %v724 = vadd.f32 0.0, %v723
        %v725 = vpop.f32.mrf.mxu0
        %726 = vmatprep.mubr.f32.mxu0 0.0
        %727 = vmatmul.mubr.f32.gmra.mxu0 %v430
        %v728 = vpop.f32.mrf.mxu0
        %v729 = vadd.f32 0.0, %v728
        %v730 = vpop.f32.mrf.mxu0
        %731 = vmatprep.mubr.f32.mxu0 0.0
        %732 = vmatmul.mubr.f32.gmra.mxu0 %v433
        %v733 = vpop.f32.mrf.mxu0
        %v734 = vadd.f32 0.0, %v733
        %v735 = vpop.f32.mrf.mxu0
        %736 = vmatprep.mubr.f32.mxu0 0.0
        %737 = vmatmul.mubr.f32.gmra.mxu0 %v436
        %v738 = vpop.f32.mrf.mxu0
        %v739 = vadd.f32 0.0, %v738
        %v740 = vpop.f32.mrf.mxu0
        %741 = vmatprep.mubr.f32.mxu0 0.0
        %742 = vmatmul.mubr.f32.gmra.mxu0 %v439
        %v743 = vpop.f32.mrf.mxu0
        %v744 = vadd.f32 0.0, %v743
        %v745 = vpop.f32.mrf.mxu0
        %746 = vmatprep.mubr.f32.mxu0 0.0
        %747 = vmatmul.mubr.f32.gmra.mxu0 %v442
        %v748 = vpop.f32.mrf.mxu0
        %v749 = vadd.f32 0.0, %v748
        %v750 = vpop.f32.mrf.mxu0
        %751 = vmatprep.mubr.f32.mxu0 0.0
        %752 = vmatmul.mubr.f32.gmra.mxu0 %v445
        %v753 = vpop.f32.mrf.mxu0
        %v754 = vadd.f32 0.0, %v753
        %v755 = vpop.f32.mrf.mxu0
        %756 = vmatprep.mubr.f32.mxu0 0.0
        %757 = vmatmul.mubr.f32.gmra.mxu0 %v448
        %v758 = vpop.f32.mrf.mxu0
        %v759 = vadd.f32 0.0, %v758
        %v760 = vpop.f32.mrf.mxu0
        %761 = vmatprep.mubr.f32.mxu0 0.0
        %762 = vmatmul.mubr.f32.gmra.mxu0 %v451
        %v763 = vpop.f32.mrf.mxu0
        %v764 = vadd.f32 0.0, %v763
        %v765 = vpop.f32.mrf.mxu0
        %766 = vmatprep.mubr.f32.mxu0 0.0
        %767 = vmatmul.mubr.f32.gmra.mxu0 %v454
        %v768 = vpop.f32.mrf.mxu0
        %v769 = vadd.f32 0.0, %v768
        %v770 = vpop.f32.mrf.mxu0
        %771 = vmatprep.mubr.f32.mxu0 0.0
        %772 = vmatmul.mubr.f32.gmra.mxu0 %v457
        %v773 = vpop.f32.mrf.mxu0
        %v774 = vadd.f32 0.0, %v773
        %v775 = vpop.f32.mrf.mxu0
        %776 = vmatprep.mubr.f32.mxu0 0.0
        %777 = vmatmul.mubr.f32.gmra.mxu0 %v460
        %v778 = vpop.f32.mrf.mxu0
        %v779 = vadd.f32 0.0, %v778
        %v780 = vpop.f32.mrf.mxu0
        %781 = vmatprep.mubr.f32.mxu0 0.0
        %782 = vmatmul.mubr.f32.gmra.mxu0 %v463
        %v783 = vpop.f32.mrf.mxu0
        %v784 = vadd.f32 0.0, %v783
        %v785 = vpop.f32.mrf.mxu0
        %786 = vmatprep.mubr.f32.mxu0 0.0
        %787 = vmatmul.mubr.f32.gmra.mxu0 %v466
        %v788 = vpop.f32.mrf.mxu0
        %v789 = vadd.f32 0.0, %v788
        %v790 = vpop.f32.mrf.mxu0
        %791 = vdwg.mxu0
        %792 = vmatprep.subr.mxu0 0.0
        %793 = vmatpush1.msra.mxu0 %v644
        %794 = vmatprep.subr.mxu0 0.0
        %795 = vmatpush1.msra.mxu0 %v643
        %796 = vmatprep.subr.mxu0 0.0
        %797 = vmatpush1.msra.mxu0 %v642
        %798 = vmatprep.subr.mxu0 0.0
        %799 = vmatpush1.msra.mxu0 %v641
        %800 = vmatprep.subr.mxu0 0.0
        %801 = vmatpush1.msra.mxu0 %v640
        %802 = vmatprep.subr.mxu0 0.0
        %803 = vmatpush1.msra.mxu0 %v639
        %804 = vmatprep.subr.mxu0 0.0
        %805 = vmatpush1.msra.mxu0 %v638
        %806 = vmatprep.subr.mxu0 0.0
        %807 = vmatpush1.msra.mxu0 %v637
        %808 = vmatprep.subr.mxu0 0.0
        %809 = vmatpush1.msra.mxu0 %v636
        %810 = vmatprep.subr.mxu0 0.0
        %811 = vmatpush1.msra.mxu0 %v635
        %812 = vmatprep.subr.mxu0 0.0
        %813 = vmatpush1.msra.mxu0 %v634
        %814 = vmatprep.subr.mxu0 0.0
        %815 = vmatpush1.msra.mxu0 %v633
        %816 = vmatprep.subr.mxu0 0.0
        %817 = vmatpush1.msra.mxu0 %v632
        %818 = vmatprep.subr.mxu0 0.0
        %819 = vmatpush1.msra.mxu0 %v631
        %820 = vmatprep.subr.mxu0 0.0
        %821 = vmatpush1.msra.mxu0 %v630
        %822 = vmatprep.subr.mxu0 0.0
        %823 = vmatpush1.msra.mxu0 %v629
        %824 = vmatprep.subr.mxu0 0.0
        %825 = vmatpush2.msra.mxu0 0.0
        %826 = vmatprep.subr.mxu0 0.0
        %827 = vmatpush2.msra.mxu0 0.0
        %828 = vmatprep.subr.mxu0 0.0
        %829 = vmatpush2.msra.mxu0 0.0
        %830 = vmatprep.subr.mxu0 0.0
        %831 = vmatpush2.msra.mxu0 0.0
        %832 = vmatprep.subr.mxu0 0.0
        %833 = vmatpush2.msra.mxu0 0.0
        %834 = vmatprep.subr.mxu0 0.0
        %835 = vmatpush2.msra.mxu0 0.0
        %836 = vmatprep.subr.mxu0 0.0
        %837 = vmatpush2.msra.mxu0 0.0
        %838 = vmatprep.subr.mxu0 0.0
        %839 = vmatpush2.msra.mxu0 0.0
        %840 = vmatprep.subr.mxu0 0.0
        %841 = vmatpush2.msra.mxu0 0.0
        %842 = vmatprep.subr.mxu0 0.0
        %843 = vmatpush2.msra.mxu0 0.0
        %844 = vmatprep.subr.mxu0 0.0
        %845 = vmatpush2.msra.mxu0 0.0
        %846 = vmatprep.subr.mxu0 0.0
        %847 = vmatpush2.msra.mxu0 0.0
        %848 = vmatprep.subr.mxu0 0.0
        %849 = vmatpush2.msra.mxu0 0.0
        %850 = vmatprep.subr.mxu0 0.0
        %851 = vmatpush2.msra.mxu0 0.0
        %852 = vmatprep.subr.mxu0 0.0
        %853 = vmatpush2.msra.mxu0 0.0
        %854 = vmatprep.subr.mxu0 0.0
        %855 = vmatpush2.msra.mxu0 0.0
        %856 = vmatprep.mubr.f32.mxu0 0.0
        %857 = vmatmul.mubr.f32.gmra.mxu0 %v613
        %v858 = vpop.f32.mrf.mxu0
        %v859 = vadd.f32 %v714, %v858
        %v860 = vpop.f32.mrf.mxu0
        %861 = vmatprep.mubr.f32.mxu0 0.0
        %862 = vmatmul.mubr.f32.gmra.mxu0 %v614
        %v863 = vpop.f32.mrf.mxu0
        %v864 = vadd.f32 %v719, %v863
        %v865 = vpop.f32.mrf.mxu0
        %866 = vmatprep.mubr.f32.mxu0 0.0
        %867 = vmatmul.mubr.f32.gmra.mxu0 %v615
        %v868 = vpop.f32.mrf.mxu0
        %v869 = vadd.f32 %v724, %v868
        %v870 = vpop.f32.mrf.mxu0
        %871 = vmatprep.mubr.f32.mxu0 0.0
        %872 = vmatmul.mubr.f32.gmra.mxu0 %v616
        %v873 = vpop.f32.mrf.mxu0
        %v874 = vadd.f32 %v729, %v873
        %v875 = vpop.f32.mrf.mxu0
        %876 = vmatprep.mubr.f32.mxu0 0.0
        %877 = vmatmul.mubr.f32.gmra.mxu0 %v617
        %v878 = vpop.f32.mrf.mxu0
        %v879 = vadd.f32 %v734, %v878
        %v880 = vpop.f32.mrf.mxu0
        %881 = vmatprep.mubr.f32.mxu0 0.0
        %882 = vmatmul.mubr.f32.gmra.mxu0 %v618
        %v883 = vpop.f32.mrf.mxu0
        %v884 = vadd.f32 %v739, %v883
        %v885 = vpop.f32.mrf.mxu0
        %886 = vmatprep.mubr.f32.mxu0 0.0
        %887 = vmatmul.mubr.f32.gmra.mxu0 %v619
        %v888 = vpop.f32.mrf.mxu0
        %v889 = vadd.f32 %v744, %v888
        %v890 = vpop.f32.mrf.mxu0
        %891 = vmatprep.mubr.f32.mxu0 0.0
        %892 = vmatmul.mubr.f32.gmra.mxu0 %v620
        %v893 = vpop.f32.mrf.mxu0
        %v894 = vadd.f32 %v749, %v893
        %v895 = vpop.f32.mrf.mxu0
        %896 = vmatprep.mubr.f32.mxu0 0.0
        %897 = vmatmul.mubr.f32.gmra.mxu0 %v621
        %v898 = vpop.f32.mrf.mxu0
        %v899 = vadd.f32 %v754, %v898
        %v900 = vpop.f32.mrf.mxu0
        %901 = vmatprep.mubr.f32.mxu0 0.0
        %902 = vmatmul.mubr.f32.gmra.mxu0 %v622
        %v903 = vpop.f32.mrf.mxu0
        %v904 = vadd.f32 %v759, %v903
        %v905 = vpop.f32.mrf.mxu0
        %906 = vmatprep.mubr.f32.mxu0 0.0
        %907 = vmatmul.mubr.f32.gmra.mxu0 %v623
        %v908 = vpop.f32.mrf.mxu0
        %v909 = vadd.f32 %v764, %v908
        %v910 = vpop.f32.mrf.mxu0
        %911 = vmatprep.mubr.f32.mxu0 0.0
        %912 = vmatmul.mubr.f32.gmra.mxu0 %v624
        %v913 = vpop.f32.mrf.mxu0
        %v914 = vadd.f32 %v769, %v913
        %v915 = vpop.f32.mrf.mxu0
        %916 = vmatprep.mubr.f32.mxu0 0.0
        %917 = vmatmul.mubr.f32.gmra.mxu0 %v625
        %v918 = vpop.f32.mrf.mxu0
        %v919 = vadd.f32 %v774, %v918
        %v920 = vpop.f32.mrf.mxu0
        %921 = vmatprep.mubr.f32.mxu0 0.0
        %922 = vmatmul.mubr.f32.gmra.mxu0 %v626
        %v923 = vpop.f32.mrf.mxu0
        %v924 = vadd.f32 %v779, %v923
        %v925 = vpop.f32.mrf.mxu0
        %926 = vmatprep.mubr.f32.mxu0 0.0
        %927 = vmatmul.mubr.f32.gmra.mxu0 %v627
        %v928 = vpop.f32.mrf.mxu0
        %v929 = vadd.f32 %v784, %v928
        %v930 = vpop.f32.mrf.mxu0
        %931 = vmatprep.mubr.f32.mxu0 0.0
        %932 = vmatmul.mubr.f32.gmra.mxu0 %v628
        %v933 = vpop.f32.mrf.mxu0
        %v934 = vadd.f32 %v789, %v933
        %v935 = vpop.f32.mrf.mxu0
        %936 = vdwg.mxu0
        %v937 = vlaneseq
        %v938 = vshrl.u32 %v937, 7
        %v939 = vsub.s32 0, %v938
        %v940 = vrot.slane %v412, %v939
        %v941 = vadd.f32 %v859, %v940
        %v942 = vadd.f32 %v864, %v940
        %v943 = vadd.f32 %v869, %v940
        %v944 = vadd.f32 %v874, %v940
        %v945 = vadd.f32 %v879, %v940
        %v946 = vadd.f32 %v884, %v940
        %v947 = vadd.f32 %v889, %v940
        %v948 = vadd.f32 %v894, %v940
        %v949 = vadd.f32 %v899, %v940
        %v950 = vadd.f32 %v904, %v940
        %v951 = vadd.f32 %v909, %v940
        %v952 = vadd.f32 %v914, %v940
        %v953 = vadd.f32 %v919, %v940
        %v954 = vadd.f32 %v924, %v940
        %v955 = vadd.f32 %v929, %v940
        %v956 = vadd.f32 %v934, %v940
        %v957 = vmax.f32 %v941, 0.0
        %v958 = vmax.f32 %v942, 0.0
        %v959 = vmax.f32 %v943, 0.0
        %v960 = vmax.f32 %v944, 0.0
        %v961 = vmax.f32 %v945, 0.0
        %v962 = vmax.f32 %v946, 0.0
        %v963 = vmax.f32 %v947, 0.0
        %v964 = vmax.f32 %v948, 0.0
        %v965 = vmax.f32 %v949, 0.0
        %v966 = vmax.f32 %v950, 0.0
        %v967 = vmax.f32 %v951, 0.0
        %v968 = vmax.f32 %v952, 0.0
        %v969 = vmax.f32 %v953, 0.0
        %v970 = vmax.f32 %v954, 0.0
        %v971 = vmax.f32 %v955, 0.0
        %v972 = vmax.f32 %v956, 0.0
        %v973 = vld [vmem:[%s1 + $0x2] sm:$0x1]
        %v974 = vld [vmem:[%s1 + $0x3] sm:$0x1]
        %v975 = vld [vmem:[#allocation4] sm:$0xff]
        %v976 = vld [vmem:[#allocation4 + $0x8] sm:$0xff]
        %v977 = vld [vmem:[#allocation4 + $0x10] sm:$0xff]
        %v978 = vld [vmem:[#allocation4 + $0x18] sm:$0xff]
        %v979 = vld [vmem:[#allocation4 + $0x20] sm:$0xff]
        %v980 = vld [vmem:[#allocation4 + $0x28] sm:$0xff]
        %v981 = vld [vmem:[#allocation4 + $0x30] sm:$0xff]
        %v982 = vld [vmem:[#allocation4 + $0x38] sm:$0xff]
        %v983 = vld [vmem:[#allocation4 + $0x40] sm:$0xff]
        %v984 = vld [vmem:[#allocation4 + $0x48] sm:$0xff]
        %v985 = vld [vmem:[#allocation4 + $0x50] sm:$0xff]
        %v986 = vld [vmem:[#allocation4 + $0x58] sm:$0xff]
        %v987 = vld [vmem:[#allocation4 + $0x60] sm:$0xff]
        %v988 = vld [vmem:[#allocation4 + $0x68] sm:$0xff]
        %v989 = vld [vmem:[#allocation4 + $0x70] sm:$0xff]
        %v990 = vld [vmem:[#allocation4 + $0x78] sm:$0xff]
        %v991 = vlaneseq
        %v992 = vshrl.u32 %v991, 7
        %v993 = vsub.s32 0, %v992
        %v994 = vrot.slane %v973, %v993
        %995 = vmatprep.subr.mxu0 0.0
        %996 = vmatpush1.msra.mxu0 %v990
        %997 = vmatprep.subr.mxu0 0.0
        %998 = vmatpush1.msra.mxu0 %v989
        %999 = vmatprep.subr.mxu0 0.0
        %1000 = vmatpush1.msra.mxu0 %v988
        %1001 = vmatprep.subr.mxu0 0.0
        %1002 = vmatpush1.msra.mxu0 %v987
        %1003 = vmatprep.subr.mxu0 0.0
        %1004 = vmatpush1.msra.mxu0 %v986
        %1005 = vmatprep.subr.mxu0 0.0
        %1006 = vmatpush1.msra.mxu0 %v985
        %1007 = vmatprep.subr.mxu0 0.0
        %1008 = vmatpush1.msra.mxu0 %v984
        %1009 = vmatprep.subr.mxu0 0.0
        %1010 = vmatpush1.msra.mxu0 %v983
        %1011 = vmatprep.subr.mxu0 0.0
        %1012 = vmatpush1.msra.mxu0 %v982
        %1013 = vmatprep.subr.mxu0 0.0
        %1014 = vmatpush1.msra.mxu0 %v981
        %1015 = vmatprep.subr.mxu0 0.0
        %1016 = vmatpush1.msra.mxu0 %v980
        %1017 = vmatprep.subr.mxu0 0.0
        %1018 = vmatpush1.msra.mxu0 %v979
        %1019 = vmatprep.subr.mxu0 0.0
        %1020 = vmatpush1.msra.mxu0 %v978
        %1021 = vmatprep.subr.mxu0 0.0
        %1022 = vmatpush1.msra.mxu0 %v977
        %1023 = vmatprep.subr.mxu0 0.0
        %1024 = vmatpush1.msra.mxu0 %v976
        %1025 = vmatprep.subr.mxu0 0.0
        %1026 = vmatpush1.msra.mxu0 %v975
        %1027 = vmatprep.subr.mxu0 0.0
        %1028 = vmatpush2.msra.mxu0 0.0
        %1029 = vmatprep.subr.mxu0 0.0
        %1030 = vmatpush2.msra.mxu0 0.0
        %1031 = vmatprep.subr.mxu0 0.0
        %1032 = vmatpush2.msra.mxu0 0.0
        %1033 = vmatprep.subr.mxu0 0.0
        %1034 = vmatpush2.msra.mxu0 0.0
        %1035 = vmatprep.subr.mxu0 0.0
        %1036 = vmatpush2.msra.mxu0 0.0
        %1037 = vmatprep.subr.mxu0 0.0
        %1038 = vmatpush2.msra.mxu0 0.0
        %1039 = vmatprep.subr.mxu0 0.0
        %1040 = vmatpush2.msra.mxu0 0.0
        %1041 = vmatprep.subr.mxu0 0.0
        %1042 = vmatpush2.msra.mxu0 0.0
        %1043 = vmatprep.subr.mxu0 0.0
        %1044 = vmatpush2.msra.mxu0 0.0
        %1045 = vmatprep.subr.mxu0 0.0
        %1046 = vmatpush2.msra.mxu0 0.0
        %1047 = vmatprep.subr.mxu0 0.0
        %1048 = vmatpush2.msra.mxu0 0.0
        %1049 = vmatprep.subr.mxu0 0.0
        %1050 = vmatpush2.msra.mxu0 0.0
        %1051 = vmatprep.subr.mxu0 0.0
        %1052 = vmatpush2.msra.mxu0 0.0
        %1053 = vmatprep.subr.mxu0 0.0
        %1054 = vmatpush2.msra.mxu0 0.0
        %1055 = vmatprep.subr.mxu0 0.0
        %1056 = vmatpush2.msra.mxu0 0.0
        %1057 = vmatprep.subr.mxu0 0.0
        %1058 = vmatpush2.msra.mxu0 0.0
        %1059 = vmatprep.mubr.f32.mxu0 0.0
        %1060 = vmatmul.mubr.f32.gmra.mxu0 %v957
        %v1061 = vpop.f32.mrf.mxu0
        %v1062 = vadd.f32 %v994, %v1061
        %v1063 = vpop.f32.mrf.mxu0
        %1064 = vmatprep.mubr.f32.mxu0 0.0
        %1065 = vmatmul.mubr.f32.gmra.mxu0 %v958
        %v1066 = vpop.f32.mrf.mxu0
        %v1067 = vadd.f32 %v994, %v1066
        %v1068 = vpop.f32.mrf.mxu0
        %1069 = vmatprep.mubr.f32.mxu0 0.0
        %1070 = vmatmul.mubr.f32.gmra.mxu0 %v959
        %v1071 = vpop.f32.mrf.mxu0
        %v1072 = vadd.f32 %v994, %v1071
        %v1073 = vpop.f32.mrf.mxu0
        %1074 = vmatprep.mubr.f32.mxu0 0.0
        %1075 = vmatmul.mubr.f32.gmra.mxu0 %v960
        %v1076 = vpop.f32.mrf.mxu0
        %v1077 = vadd.f32 %v994, %v1076
        %v1078 = vpop.f32.mrf.mxu0
        %1079 = vmatprep.mubr.f32.mxu0 0.0
        %1080 = vmatmul.mubr.f32.gmra.mxu0 %v961
        %v1081 = vpop.f32.mrf.mxu0
        %v1082 = vadd.f32 %v994, %v1081
        %v1083 = vpop.f32.mrf.mxu0
        %1084 = vmatprep.mubr.f32.mxu0 0.0
        %1085 = vmatmul.mubr.f32.gmra.mxu0 %v962
        %v1086 = vpop.f32.mrf.mxu0
        %v1087 = vadd.f32 %v994, %v1086
        %v1088 = vpop.f32.mrf.mxu0
        %1089 = vmatprep.mubr.f32.mxu0 0.0
        %1090 = vmatmul.mubr.f32.gmra.mxu0 %v963
        %v1091 = vpop.f32.mrf.mxu0
        %v1092 = vadd.f32 %v994, %v1091
        %v1093 = vpop.f32.mrf.mxu0
        %1094 = vmatprep.mubr.f32.mxu0 0.0
        %1095 = vmatmul.mubr.f32.gmra.mxu0 %v964
        %v1096 = vpop.f32.mrf.mxu0
        %v1097 = vadd.f32 %v994, %v1096
        %v1098 = vpop.f32.mrf.mxu0
        %1099 = vmatprep.mubr.f32.mxu0 0.0
        %1100 = vmatmul.mubr.f32.gmra.mxu0 %v965
        %v1101 = vpop.f32.mrf.mxu0
        %v1102 = vadd.f32 %v994, %v1101
        %v1103 = vpop.f32.mrf.mxu0
        %1104 = vmatprep.mubr.f32.mxu0 0.0
        %1105 = vmatmul.mubr.f32.gmra.mxu0 %v966
        %v1106 = vpop.f32.mrf.mxu0
        %v1107 = vadd.f32 %v994, %v1106
        %v1108 = vpop.f32.mrf.mxu0
        %1109 = vmatprep.mubr.f32.mxu0 0.0
        %1110 = vmatmul.mubr.f32.gmra.mxu0 %v967
        %v1111 = vpop.f32.mrf.mxu0
        %v1112 = vadd.f32 %v994, %v1111
        %v1113 = vpop.f32.mrf.mxu0
        %1114 = vmatprep.mubr.f32.mxu0 0.0
        %1115 = vmatmul.mubr.f32.gmra.mxu0 %v968
        %v1116 = vpop.f32.mrf.mxu0
        %v1117 = vadd.f32 %v994, %v1116
        %v1118 = vpop.f32.mrf.mxu0
        %1119 = vmatprep.mubr.f32.mxu0 0.0
        %1120 = vmatmul.mubr.f32.gmra.mxu0 %v969
        %v1121 = vpop.f32.mrf.mxu0
        %v1122 = vadd.f32 %v994, %v1121
        %v1123 = vpop.f32.mrf.mxu0
        %1124 = vmatprep.mubr.f32.mxu0 0.0
        %1125 = vmatmul.mubr.f32.gmra.mxu0 %v970
        %v1126 = vpop.f32.mrf.mxu0
        %v1127 = vadd.f32 %v994, %v1126
        %v1128 = vpop.f32.mrf.mxu0
        %1129 = vmatprep.mubr.f32.mxu0 0.0
        %1130 = vmatmul.mubr.f32.gmra.mxu0 %v971
        %v1131 = vpop.f32.mrf.mxu0
        %v1132 = vadd.f32 %v994, %v1131
        %v1133 = vpop.f32.mrf.mxu0
        %1134 = vmatprep.mubr.f32.mxu0 0.0
        %1135 = vmatmul.mubr.f32.gmra.mxu0 %v972
        %v1136 = vpop.f32.mrf.mxu0
        %v1137 = vadd.f32 %v994, %v1136
        %v1138 = vpop.f32.mrf.mxu0
        %1139 = vdwg.mxu0
        %v1140 = vmax.f32 %v1062, 0.0
        %v1141 = vmax.f32 %v1067, 0.0
        %v1142 = vmax.f32 %v1072, 0.0
        %v1143 = vmax.f32 %v1077, 0.0
        %v1144 = vmax.f32 %v1082, 0.0
        %v1145 = vmax.f32 %v1087, 0.0
        %v1146 = vmax.f32 %v1092, 0.0
        %v1147 = vmax.f32 %v1097, 0.0
        %v1148 = vmax.f32 %v1102, 0.0
        %v1149 = vmax.f32 %v1107, 0.0
        %v1150 = vmax.f32 %v1112, 0.0
        %v1151 = vmax.f32 %v1117, 0.0
        %v1152 = vmax.f32 %v1122, 0.0
        %v1153 = vmax.f32 %v1127, 0.0
        %v1154 = vmax.f32 %v1132, 0.0
        %v1155 = vmax.f32 %v1137, 0.0
        %v1156 = vld [vmem:[#allocation6] sm:$0xff]
        %v1157 = vld [vmem:[#allocation6 + $0x8] sm:$0xff]
        %v1158 = vld [vmem:[#allocation6 + $0x10] sm:$0xff]
        %v1159 = vld [vmem:[#allocation6 + $0x18] sm:$0xff]
        %v1160 = vld [vmem:[#allocation6 + $0x20] sm:$0xff]
        %v1161 = vld [vmem:[#allocation6 + $0x28] sm:$0xff]
        %v1162 = vld [vmem:[#allocation6 + $0x30] sm:$0xff]
        %v1163 = vld [vmem:[#allocation6 + $0x38] sm:$0xff]
        %v1164 = vld [vmem:[#allocation6 + $0x40] sm:$0xff]
        %v1165 = vld [vmem:[#allocation6 + $0x48] sm:$0xff]
        %v1166 = vld [vmem:[#allocation6 + $0x50] sm:$0xff]
        %v1167 = vld [vmem:[#allocation6 + $0x58] sm:$0xff]
        %v1168 = vld [vmem:[#allocation6 + $0x60] sm:$0xff]
        %v1169 = vld [vmem:[#allocation6 + $0x68] sm:$0xff]
        %v1170 = vld [vmem:[#allocation6 + $0x70] sm:$0xff]
        %v1171 = vld [vmem:[#allocation6 + $0x78] sm:$0xff]
        %v1172 = vlaneseq
        %v1173 = vshrl.u32 %v1172, 7
        %v1174 = vsub.s32 0, %v1173
        %v1175 = vrot.slane %v974, %v1174
        %1176 = vmatprep.subr.mxu0 0.0
        %1177 = vmatpush1.msra.mxu0 %v1171
        %1178 = vmatprep.subr.mxu0 0.0
        %1179 = vmatpush1.msra.mxu0 %v1170
        %1180 = vmatprep.subr.mxu0 0.0
        %1181 = vmatpush1.msra.mxu0 %v1169
        %1182 = vmatprep.subr.mxu0 0.0
        %1183 = vmatpush1.msra.mxu0 %v1168
        %1184 = vmatprep.subr.mxu0 0.0
        %1185 = vmatpush1.msra.mxu0 %v1167
        %1186 = vmatprep.subr.mxu0 0.0
        %1187 = vmatpush1.msra.mxu0 %v1166
        %1188 = vmatprep.subr.mxu0 0.0
        %1189 = vmatpush1.msra.mxu0 %v1165
        %1190 = vmatprep.subr.mxu0 0.0
        %1191 = vmatpush1.msra.mxu0 %v1164
        %1192 = vmatprep.subr.mxu0 0.0
        %1193 = vmatpush1.msra.mxu0 %v1163
        %1194 = vmatprep.subr.mxu0 0.0
        %1195 = vmatpush1.msra.mxu0 %v1162
        %1196 = vmatprep.subr.mxu0 0.0
        %1197 = vmatpush1.msra.mxu0 %v1161
        %1198 = vmatprep.subr.mxu0 0.0
        %1199 = vmatpush1.msra.mxu0 %v1160
        %1200 = vmatprep.subr.mxu0 0.0
        %1201 = vmatpush1.msra.mxu0 %v1159
        %1202 = vmatprep.subr.mxu0 0.0
        %1203 = vmatpush1.msra.mxu0 %v1158
        %1204 = vmatprep.subr.mxu0 0.0
        %1205 = vmatpush1.msra.mxu0 %v1157
        %1206 = vmatprep.subr.mxu0 0.0
        %1207 = vmatpush1.msra.mxu0 %v1156
        %1208 = vmatprep.subr.mxu0 0.0
        %1209 = vmatpush2.msra.mxu0 0.0
        %1210 = vmatprep.subr.mxu0 0.0
        %1211 = vmatpush2.msra.mxu0 0.0
        %1212 = vmatprep.subr.mxu0 0.0
        %1213 = vmatpush2.msra.mxu0 0.0
        %1214 = vmatprep.subr.mxu0 0.0
        %1215 = vmatpush2.msra.mxu0 0.0
        %1216 = vmatprep.subr.mxu0 0.0
        %1217 = vmatpush2.msra.mxu0 0.0
        %1218 = vmatprep.subr.mxu0 0.0
        %1219 = vmatpush2.msra.mxu0 0.0
        %1220 = vmatprep.subr.mxu0 0.0
        %1221 = vmatpush2.msra.mxu0 0.0
        %1222 = vmatprep.subr.mxu0 0.0
        %1223 = vmatpush2.msra.mxu0 0.0
        %1224 = vmatprep.subr.mxu0 0.0
        %1225 = vmatpush2.msra.mxu0 0.0
        %1226 = vmatprep.subr.mxu0 0.0
        %1227 = vmatpush2.msra.mxu0 0.0
        %1228 = vmatprep.subr.mxu0 0.0
        %1229 = vmatpush2.msra.mxu0 0.0
        %1230 = vmatprep.subr.mxu0 0.0
        %1231 = vmatpush2.msra.mxu0 0.0
        %1232 = vmatprep.subr.mxu0 0.0
        %1233 = vmatpush2.msra.mxu0 0.0
        %1234 = vmatprep.subr.mxu0 0.0
        %1235 = vmatpush2.msra.mxu0 0.0
        %1236 = vmatprep.subr.mxu0 0.0
        %1237 = vmatpush2.msra.mxu0 0.0
        %1238 = vmatprep.subr.mxu0 0.0
        %1239 = vmatpush2.msra.mxu0 0.0
        %1240 = vmatprep.mubr.f32.mxu0 0.0
        %1241 = vmatmul.mubr.f32.gmra.mxu0 %v1140
        %v1242 = vpop.f32.mrf.mxu0
        %v1243 = vadd.f32 %v1175, %v1242
        %v1244 = vpop.f32.mrf.mxu0
        %1245 = vmatprep.mubr.f32.mxu0 0.0
        %1246 = vmatmul.mubr.f32.gmra.mxu0 %v1141
        %v1247 = vpop.f32.mrf.mxu0
        %v1248 = vadd.f32 %v1175, %v1247
        %v1249 = vpop.f32.mrf.mxu0
        %1250 = vmatprep.mubr.f32.mxu0 0.0
        %1251 = vmatmul.mubr.f32.gmra.mxu0 %v1142
        %v1252 = vpop.f32.mrf.mxu0
        %v1253 = vadd.f32 %v1175, %v1252
        %v1254 = vpop.f32.mrf.mxu0
        %1255 = vmatprep.mubr.f32.mxu0 0.0
        %1256 = vmatmul.mubr.f32.gmra.mxu0 %v1143
        %v1257 = vpop.f32.mrf.mxu0
        %v1258 = vadd.f32 %v1175, %v1257
        %v1259 = vpop.f32.mrf.mxu0
        %1260 = vmatprep.mubr.f32.mxu0 0.0
        %1261 = vmatmul.mubr.f32.gmra.mxu0 %v1144
        %v1262 = vpop.f32.mrf.mxu0
        %v1263 = vadd.f32 %v1175, %v1262
        %v1264 = vpop.f32.mrf.mxu0
        %1265 = vmatprep.mubr.f32.mxu0 0.0
        %1266 = vmatmul.mubr.f32.gmra.mxu0 %v1145
        %v1267 = vpop.f32.mrf.mxu0
        %v1268 = vadd.f32 %v1175, %v1267
        %v1269 = vpop.f32.mrf.mxu0
        %1270 = vmatprep.mubr.f32.mxu0 0.0
        %1271 = vmatmul.mubr.f32.gmra.mxu0 %v1146
        %v1272 = vpop.f32.mrf.mxu0
        %v1273 = vadd.f32 %v1175, %v1272
        %v1274 = vpop.f32.mrf.mxu0
        %1275 = vmatprep.mubr.f32.mxu0 0.0
        %1276 = vmatmul.mubr.f32.gmra.mxu0 %v1147
        %v1277 = vpop.f32.mrf.mxu0
        %v1278 = vadd.f32 %v1175, %v1277
        %v1279 = vpop.f32.mrf.mxu0
        %1280 = vmatprep.mubr.f32.mxu0 0.0
        %1281 = vmatmul.mubr.f32.gmra.mxu0 %v1148
        %v1282 = vpop.f32.mrf.mxu0
        %v1283 = vadd.f32 %v1175, %v1282
        %v1284 = vpop.f32.mrf.mxu0
        %1285 = vmatprep.mubr.f32.mxu0 0.0
        %1286 = vmatmul.mubr.f32.gmra.mxu0 %v1149
        %v1287 = vpop.f32.mrf.mxu0
        %v1288 = vadd.f32 %v1175, %v1287
        %v1289 = vpop.f32.mrf.mxu0
        %1290 = vmatprep.mubr.f32.mxu0 0.0
        %1291 = vmatmul.mubr.f32.gmra.mxu0 %v1150
        %v1292 = vpop.f32.mrf.mxu0
        %v1293 = vadd.f32 %v1175, %v1292
        %v1294 = vpop.f32.mrf.mxu0
        %1295 = vmatprep.mubr.f32.mxu0 0.0
        %1296 = vmatmul.mubr.f32.gmra.mxu0 %v1151
        %v1297 = vpop.f32.mrf.mxu0
        %v1298 = vadd.f32 %v1175, %v1297
        %v1299 = vpop.f32.mrf.mxu0
        %1300 = vmatprep.mubr.f32.mxu0 0.0
        %1301 = vmatmul.mubr.f32.gmra.mxu0 %v1152
        %v1302 = vpop.f32.mrf.mxu0
        %v1303 = vadd.f32 %v1175, %v1302
        %v1304 = vpop.f32.mrf.mxu0
        %1305 = vmatprep.mubr.f32.mxu0 0.0
        %1306 = vmatmul.mubr.f32.gmra.mxu0 %v1153
        %v1307 = vpop.f32.mrf.mxu0
        %v1308 = vadd.f32 %v1175, %v1307
        %v1309 = vpop.f32.mrf.mxu0
        %1310 = vmatprep.mubr.f32.mxu0 0.0
        %1311 = vmatmul.mubr.f32.gmra.mxu0 %v1154
        %v1312 = vpop.f32.mrf.mxu0
        %v1313 = vadd.f32 %v1175, %v1312
        %v1314 = vpop.f32.mrf.mxu0
        %1315 = vmatprep.mubr.f32.mxu0 0.0
        %1316 = vmatmul.mubr.f32.gmra.mxu0 %v1155
        %v1317 = vpop.f32.mrf.mxu0
        %v1318 = vadd.f32 %v1175, %v1317
        %v1319 = vpop.f32.mrf.mxu0
        %1320 = vdwg.mxu0
        %v1321 = vadd.f32 %v1243, %v957
        %v1322 = vadd.f32 %v1248, %v958
        %v1323 = vadd.f32 %v1253, %v959
        %v1324 = vadd.f32 %v1258, %v960
        %v1325 = vadd.f32 %v1263, %v961
        %v1326 = vadd.f32 %v1268, %v962
        %v1327 = vadd.f32 %v1273, %v963
        %v1328 = vadd.f32 %v1278, %v964
        %v1329 = vadd.f32 %v1283, %v965
        %v1330 = vadd.f32 %v1288, %v966
        %v1331 = vadd.f32 %v1293, %v967
        %v1332 = vadd.f32 %v1298, %v968
        %v1333 = vadd.f32 %v1303, %v969
        %v1334 = vadd.f32 %v1308, %v970
        %v1335 = vadd.f32 %v1313, %v971
        %v1336 = vadd.f32 %v1318, %v972
        %v1337 = vmax.f32 %v1321, 0.0
        %v1338 = vmax.f32 %v1322, 0.0
        %v1339 = vmax.f32 %v1323, 0.0
        %v1340 = vmax.f32 %v1324, 0.0
        %v1341 = vmax.f32 %v1325, 0.0
        %v1342 = vmax.f32 %v1326, 0.0
        %v1343 = vmax.f32 %v1327, 0.0
        %v1344 = vmax.f32 %v1328, 0.0
        %v1345 = vmax.f32 %v1329, 0.0
        %v1346 = vmax.f32 %v1330, 0.0
        %v1347 = vmax.f32 %v1331, 0.0
        %v1348 = vmax.f32 %v1332, 0.0
        %v1349 = vmax.f32 %v1333, 0.0
        %v1350 = vmax.f32 %v1334, 0.0
        %v1351 = vmax.f32 %v1335, 0.0
        %v1352 = vmax.f32 %v1336, 0.0
        %v1353 = vld [vmem:[%s1 + $0x4] sm:$0x1]
        %v1354 = vld [vmem:[%s1 + $0x5] sm:$0x1]
        %v1355 = vld [vmem:[#allocation7] sm:$0xff]
        %v1356 = vld [vmem:[#allocation7 + $0x8] sm:$0xff]
        %v1357 = vld [vmem:[#allocation7 + $0x10] sm:$0xff]
        %v1358 = vld [vmem:[#allocation7 + $0x18] sm:$0xff]
        %v1359 = vld [vmem:[#allocation7 + $0x20] sm:$0xff]
        %v1360 = vld [vmem:[#allocation7 + $0x28] sm:$0xff]
        %v1361 = vld [vmem:[#allocation7 + $0x30] sm:$0xff]
        %v1362 = vld [vmem:[#allocation7 + $0x38] sm:$0xff]
        %v1363 = vld [vmem:[#allocation7 + $0x40] sm:$0xff]
        %v1364 = vld [vmem:[#allocation7 + $0x48] sm:$0xff]
        %v1365 = vld [vmem:[#allocation7 + $0x50] sm:$0xff]
        %v1366 = vld [vmem:[#allocation7 + $0x58] sm:$0xff]
        %v1367 = vld [vmem:[#allocation7 + $0x60] sm:$0xff]
        %v1368 = vld [vmem:[#allocation7 + $0x68] sm:$0xff]
        %v1369 = vld [vmem:[#allocation7 + $0x70] sm:$0xff]
        %v1370 = vld [vmem:[#allocation7 + $0x78] sm:$0xff]
        %v1371 = vlaneseq
        %v1372 = vshrl.u32 %v1371, 7
        %v1373 = vsub.s32 0, %v1372
        %v1374 = vrot.slane %v1353, %v1373
        %1375 = vmatprep.subr.mxu0 0.0
        %1376 = vmatpush1.msra.mxu0 %v1370
        %1377 = vmatprep.subr.mxu0 0.0
        %1378 = vmatpush1.msra.mxu0 %v1369
        %1379 = vmatprep.subr.mxu0 0.0
        %1380 = vmatpush1.msra.mxu0 %v1368
        %1381 = vmatprep.subr.mxu0 0.0
        %1382 = vmatpush1.msra.mxu0 %v1367
        %1383 = vmatprep.subr.mxu0 0.0
        %1384 = vmatpush1.msra.mxu0 %v1366
        %1385 = vmatprep.subr.mxu0 0.0
        %1386 = vmatpush1.msra.mxu0 %v1365
        %1387 = vmatprep.subr.mxu0 0.0
        %1388 = vmatpush1.msra.mxu0 %v1364
        %1389 = vmatprep.subr.mxu0 0.0
        %1390 = vmatpush1.msra.mxu0 %v1363
        %1391 = vmatprep.subr.mxu0 0.0
        %1392 = vmatpush1.msra.mxu0 %v1362
        %1393 = vmatprep.subr.mxu0 0.0
        %1394 = vmatpush1.msra.mxu0 %v1361
        %1395 = vmatprep.subr.mxu0 0.0
        %1396 = vmatpush1.msra.mxu0 %v1360
        %1397 = vmatprep.subr.mxu0 0.0
        %1398 = vmatpush1.msra.mxu0 %v1359
        %1399 = vmatprep.subr.mxu0 0.0
        %1400 = vmatpush1.msra.mxu0 %v1358
        %1401 = vmatprep.subr.mxu0 0.0
        %1402 = vmatpush1.msra.mxu0 %v1357
        %1403 = vmatprep.subr.mxu0 0.0
        %1404 = vmatpush1.msra.mxu0 %v1356
        %1405 = vmatprep.subr.mxu0 0.0
        %1406 = vmatpush1.msra.mxu0 %v1355
        %1407 = vmatprep.subr.mxu0 0.0
        %1408 = vmatpush2.msra.mxu0 0.0
        %1409 = vmatprep.subr.mxu0 0.0
        %1410 = vmatpush2.msra.mxu0 0.0
        %1411 = vmatprep.subr.mxu0 0.0
        %1412 = vmatpush2.msra.mxu0 0.0
        %1413 = vmatprep.subr.mxu0 0.0
        %1414 = vmatpush2.msra.mxu0 0.0
        %1415 = vmatprep.subr.mxu0 0.0
        %1416 = vmatpush2.msra.mxu0 0.0
        %1417 = vmatprep.subr.mxu0 0.0
        %1418 = vmatpush2.msra.mxu0 0.0
        %1419 = vmatprep.subr.mxu0 0.0
        %1420 = vmatpush2.msra.mxu0 0.0
        %1421 = vmatprep.subr.mxu0 0.0
        %1422 = vmatpush2.msra.mxu0 0.0
        %1423 = vmatprep.subr.mxu0 0.0
        %1424 = vmatpush2.msra.mxu0 0.0
        %1425 = vmatprep.subr.mxu0 0.0
        %1426 = vmatpush2.msra.mxu0 0.0
        %1427 = vmatprep.subr.mxu0 0.0
        %1428 = vmatpush2.msra.mxu0 0.0
        %1429 = vmatprep.subr.mxu0 0.0
        %1430 = vmatpush2.msra.mxu0 0.0
        %1431 = vmatprep.subr.mxu0 0.0
        %1432 = vmatpush2.msra.mxu0 0.0
        %1433 = vmatprep.subr.mxu0 0.0
        %1434 = vmatpush2.msra.mxu0 0.0
        %1435 = vmatprep.subr.mxu0 0.0
        %1436 = vmatpush2.msra.mxu0 0.0
        %1437 = vmatprep.subr.mxu0 0.0
        %1438 = vmatpush2.msra.mxu0 0.0
        %1439 = vmatprep.mubr.f32.mxu0 0.0
        %1440 = vmatmul.mubr.f32.gmra.mxu0 %v1337
        %v1441 = vpop.f32.mrf.mxu0
        %v1442 = vadd.f32 %v1374, %v1441
        %v1443 = vpop.f32.mrf.mxu0
        %1444 = vmatprep.mubr.f32.mxu0 0.0
        %1445 = vmatmul.mubr.f32.gmra.mxu0 %v1338
        %v1446 = vpop.f32.mrf.mxu0
        %v1447 = vadd.f32 %v1374, %v1446
        %v1448 = vpop.f32.mrf.mxu0
        %1449 = vmatprep.mubr.f32.mxu0 0.0
        %1450 = vmatmul.mubr.f32.gmra.mxu0 %v1339
        %v1451 = vpop.f32.mrf.mxu0
        %v1452 = vadd.f32 %v1374, %v1451
        %v1453 = vpop.f32.mrf.mxu0
        %1454 = vmatprep.mubr.f32.mxu0 0.0
        %1455 = vmatmul.mubr.f32.gmra.mxu0 %v1340
        %v1456 = vpop.f32.mrf.mxu0
        %v1457 = vadd.f32 %v1374, %v1456
        %v1458 = vpop.f32.mrf.mxu0
        %1459 = vmatprep.mubr.f32.mxu0 0.0
        %1460 = vmatmul.mubr.f32.gmra.mxu0 %v1341
        %v1461 = vpop.f32.mrf.mxu0
        %v1462 = vadd.f32 %v1374, %v1461
        %v1463 = vpop.f32.mrf.mxu0
        %1464 = vmatprep.mubr.f32.mxu0 0.0
        %1465 = vmatmul.mubr.f32.gmra.mxu0 %v1342
        %v1466 = vpop.f32.mrf.mxu0
        %v1467 = vadd.f32 %v1374, %v1466
        %v1468 = vpop.f32.mrf.mxu0
        %1469 = vmatprep.mubr.f32.mxu0 0.0
        %1470 = vmatmul.mubr.f32.gmra.mxu0 %v1343
        %v1471 = vpop.f32.mrf.mxu0
        %v1472 = vadd.f32 %v1374, %v1471
        %v1473 = vpop.f32.mrf.mxu0
        %1474 = vmatprep.mubr.f32.mxu0 0.0
        %1475 = vmatmul.mubr.f32.gmra.mxu0 %v1344
        %v1476 = vpop.f32.mrf.mxu0
        %v1477 = vadd.f32 %v1374, %v1476
        %v1478 = vpop.f32.mrf.mxu0
        %1479 = vmatprep.mubr.f32.mxu0 0.0
        %1480 = vmatmul.mubr.f32.gmra.mxu0 %v1345
        %v1481 = vpop.f32.mrf.mxu0
        %v1482 = vadd.f32 %v1374, %v1481
        %v1483 = vpop.f32.mrf.mxu0
        %1484 = vmatprep.mubr.f32.mxu0 0.0
        %1485 = vmatmul.mubr.f32.gmra.mxu0 %v1346
        %v1486 = vpop.f32.mrf.mxu0
        %v1487 = vadd.f32 %v1374, %v1486
        %v1488 = vpop.f32.mrf.mxu0
        %1489 = vmatprep.mubr.f32.mxu0 0.0
        %1490 = vmatmul.mubr.f32.gmra.mxu0 %v1347
        %v1491 = vpop.f32.mrf.mxu0
        %v1492 = vadd.f32 %v1374, %v1491
        %v1493 = vpop.f32.mrf.mxu0
        %1494 = vmatprep.mubr.f32.mxu0 0.0
        %1495 = vmatmul.mubr.f32.gmra.mxu0 %v1348
        %v1496 = vpop.f32.mrf.mxu0
        %v1497 = vadd.f32 %v1374, %v1496
        %v1498 = vpop.f32.mrf.mxu0
        %1499 = vmatprep.mubr.f32.mxu0 0.0
        %1500 = vmatmul.mubr.f32.gmra.mxu0 %v1349
        %v1501 = vpop.f32.mrf.mxu0
        %v1502 = vadd.f32 %v1374, %v1501
        %v1503 = vpop.f32.mrf.mxu0
        %1504 = vmatprep.mubr.f32.mxu0 0.0
        %1505 = vmatmul.mubr.f32.gmra.mxu0 %v1350
        %v1506 = vpop.f32.mrf.mxu0
        %v1507 = vadd.f32 %v1374, %v1506
        %v1508 = vpop.f32.mrf.mxu0
        %1509 = vmatprep.mubr.f32.mxu0 0.0
        %1510 = vmatmul.mubr.f32.gmra.mxu0 %v1351
        %v1511 = vpop.f32.mrf.mxu0
        %v1512 = vadd.f32 %v1374, %v1511
        %v1513 = vpop.f32.mrf.mxu0
        %1514 = vmatprep.mubr.f32.mxu0 0.0
        %1515 = vmatmul.mubr.f32.gmra.mxu0 %v1352
        %v1516 = vpop.f32.mrf.mxu0
        %v1517 = vadd.f32 %v1374, %v1516
        %v1518 = vpop.f32.mrf.mxu0
        %1519 = vdwg.mxu0
        %v1520 = vmax.f32 %v1442, 0.0
        %v1521 = vmax.f32 %v1447, 0.0
        %v1522 = vmax.f32 %v1452, 0.0
        %v1523 = vmax.f32 %v1457, 0.0
        %v1524 = vmax.f32 %v1462, 0.0
        %v1525 = vmax.f32 %v1467, 0.0
        %v1526 = vmax.f32 %v1472, 0.0
        %v1527 = vmax.f32 %v1477, 0.0
        %v1528 = vmax.f32 %v1482, 0.0
        %v1529 = vmax.f32 %v1487, 0.0
        %v1530 = vmax.f32 %v1492, 0.0
        %v1531 = vmax.f32 %v1497, 0.0
        %v1532 = vmax.f32 %v1502, 0.0
        %v1533 = vmax.f32 %v1507, 0.0
        %v1534 = vmax.f32 %v1512, 0.0
        %v1535 = vmax.f32 %v1517, 0.0
        %v1536 = vld [vmem:[%s8] sm:$0xff]
        %v1537 = vld [vmem:[%s8 + $0x8] sm:$0xff]
        %v1538 = vld [vmem:[%s8 + $0x10] sm:$0xff]
        %v1539 = vld [vmem:[%s8 + $0x18] sm:$0xff]
        %v1540 = vld [vmem:[%s8 + $0x20] sm:$0xff]
        %v1541 = vld [vmem:[%s8 + $0x28] sm:$0xff]
        %v1542 = vld [vmem:[%s8 + $0x30] sm:$0xff]
        %v1543 = vld [vmem:[%s8 + $0x38] sm:$0xff]
        %v1544 = vld [vmem:[%s8 + $0x40] sm:$0xff]
        %v1545 = vld [vmem:[%s8 + $0x48] sm:$0xff]
        %v1546 = vld [vmem:[%s8 + $0x50] sm:$0xff]
        %v1547 = vld [vmem:[%s8 + $0x58] sm:$0xff]
        %v1548 = vld [vmem:[%s8 + $0x60] sm:$0xff]
        %v1549 = vld [vmem:[%s8 + $0x68] sm:$0xff]
        %v1550 = vld [vmem:[%s8 + $0x70] sm:$0xff]
        %v1551 = vld [vmem:[%s8 + $0x78] sm:$0xff]
        %v1552 = vld [vmem:[%s8 + $0x80] sm:$0xff]
        %v1553 = vld [vmem:[%s8 + $0x88] sm:$0xff]
        %v1554 = vld [vmem:[%s8 + $0x90] sm:$0xff]
        %v1555 = vld [vmem:[%s8 + $0x98] sm:$0xff]
        %v1556 = vld [vmem:[%s8 + $0xa0] sm:$0xff]
        %v1557 = vld [vmem:[%s8 + $0xa8] sm:$0xff]
        %v1558 = vld [vmem:[%s8 + $0xb0] sm:$0xff]
        %v1559 = vld [vmem:[%s8 + $0xb8] sm:$0xff]
        %v1560 = vld [vmem:[%s8 + $0xc0] sm:$0xff]
        %v1561 = vld [vmem:[%s8 + $0xc8] sm:$0xff]
        %v1562 = vld [vmem:[%s8 + $0xd0] sm:$0xff]
        %v1563 = vld [vmem:[%s8 + $0xd8] sm:$0xff]
        %v1564 = vld [vmem:[%s8 + $0xe0] sm:$0xff]
        %v1565 = vld [vmem:[%s8 + $0xe8] sm:$0xff]
        %v1566 = vld [vmem:[%s8 + $0xf0] sm:$0xff]
        %v1567 = vld [vmem:[%s8 + $0xf8] sm:$0xff]
        %v1568 = vlaneseq
        %v1569 = vshrl.u32 %v1568, 7
        %v1570 = vsub.s32 0, %v1569
        %v1571 = vrot.slane %v1354, %v1570
        %1572 = vmatprep.subr.mxu0 0.0
        %1573 = vmatpush1.msra.mxu0 %v1551
        %1574 = vmatprep.subr.mxu0 0.0
        %1575 = vmatpush1.msra.mxu0 %v1550
        %1576 = vmatprep.subr.mxu0 0.0
        %1577 = vmatpush1.msra.mxu0 %v1549
        %1578 = vmatprep.subr.mxu0 0.0
        %1579 = vmatpush1.msra.mxu0 %v1548
        %1580 = vmatprep.subr.mxu0 0.0
        %1581 = vmatpush1.msra.mxu0 %v1547
        %1582 = vmatprep.subr.mxu0 0.0
        %1583 = vmatpush1.msra.mxu0 %v1546
        %1584 = vmatprep.subr.mxu0 0.0
        %1585 = vmatpush1.msra.mxu0 %v1545
        %1586 = vmatprep.subr.mxu0 0.0
        %1587 = vmatpush1.msra.mxu0 %v1544
        %1588 = vmatprep.subr.mxu0 0.0
        %1589 = vmatpush1.msra.mxu0 %v1543
        %1590 = vmatprep.subr.mxu0 0.0
        %1591 = vmatpush1.msra.mxu0 %v1542
        %1592 = vmatprep.subr.mxu0 0.0
        %1593 = vmatpush1.msra.mxu0 %v1541
        %1594 = vmatprep.subr.mxu0 0.0
        %1595 = vmatpush1.msra.mxu0 %v1540
        %1596 = vmatprep.subr.mxu0 0.0
        %1597 = vmatpush1.msra.mxu0 %v1539
        %1598 = vmatprep.subr.mxu0 0.0
        %1599 = vmatpush1.msra.mxu0 %v1538
        %1600 = vmatprep.subr.mxu0 0.0
        %1601 = vmatpush1.msra.mxu0 %v1537
        %1602 = vmatprep.subr.mxu0 0.0
        %1603 = vmatpush1.msra.mxu0 %v1536
        %1604 = vmatprep.subr.mxu0 0.0
        %1605 = vmatpush2.msra.mxu0 %v1567
        %1606 = vmatprep.subr.mxu0 0.0
        %1607 = vmatpush2.msra.mxu0 %v1566
        %1608 = vmatprep.subr.mxu0 0.0
        %1609 = vmatpush2.msra.mxu0 %v1565
        %1610 = vmatprep.subr.mxu0 0.0
        %1611 = vmatpush2.msra.mxu0 %v1564
        %1612 = vmatprep.subr.mxu0 0.0
        %1613 = vmatpush2.msra.mxu0 %v1563
        %1614 = vmatprep.subr.mxu0 0.0
        %1615 = vmatpush2.msra.mxu0 %v1562
        %1616 = vmatprep.subr.mxu0 0.0
        %1617 = vmatpush2.msra.mxu0 %v1561
        %1618 = vmatprep.subr.mxu0 0.0
        %1619 = vmatpush2.msra.mxu0 %v1560
        %1620 = vmatprep.subr.mxu0 0.0
        %1621 = vmatpush2.msra.mxu0 %v1559
        %1622 = vmatprep.subr.mxu0 0.0
        %1623 = vmatpush2.msra.mxu0 %v1558
        %1624 = vmatprep.subr.mxu0 0.0
        %1625 = vmatpush2.msra.mxu0 %v1557
        %1626 = vmatprep.subr.mxu0 0.0
        %1627 = vmatpush2.msra.mxu0 %v1556
        %1628 = vmatprep.subr.mxu0 0.0
        %1629 = vmatpush2.msra.mxu0 %v1555
        %1630 = vmatprep.subr.mxu0 0.0
        %1631 = vmatpush2.msra.mxu0 %v1554
        %1632 = vmatprep.subr.mxu0 0.0
        %1633 = vmatpush2.msra.mxu0 %v1553
        %1634 = vmatprep.subr.mxu0 0.0
        %1635 = vmatpush2.msra.mxu0 %v1552
        %1636 = vmatprep.mubr.f32.mxu0 %v1337
        %1637 = vmatmul.mubr.f32.gmra.mxu0 %v1520
        %v1638 = vpop.f32.mrf.mxu0
        %v1639 = vadd.f32 %v1571, %v1638
        %v1640 = vpop.f32.mrf.mxu0
        %1641 = vmatprep.mubr.f32.mxu0 %v1338
        %1642 = vmatmul.mubr.f32.gmra.mxu0 %v1521
        %v1643 = vpop.f32.mrf.mxu0
        %v1644 = vadd.f32 %v1571, %v1643
        %v1645 = vpop.f32.mrf.mxu0
        %1646 = vmatprep.mubr.f32.mxu0 %v1339
        %1647 = vmatmul.mubr.f32.gmra.mxu0 %v1522
        %v1648 = vpop.f32.mrf.mxu0
        %v1649 = vadd.f32 %v1571, %v1648
        %v1650 = vpop.f32.mrf.mxu0
        %1651 = vmatprep.mubr.f32.mxu0 %v1340
        %1652 = vmatmul.mubr.f32.gmra.mxu0 %v1523
        %v1653 = vpop.f32.mrf.mxu0
        %v1654 = vadd.f32 %v1571, %v1653
        %v1655 = vpop.f32.mrf.mxu0
        %1656 = vmatprep.mubr.f32.mxu0 %v1341
        %1657 = vmatmul.mubr.f32.gmra.mxu0 %v1524
        %v1658 = vpop.f32.mrf.mxu0
        %v1659 = vadd.f32 %v1571, %v1658
        %v1660 = vpop.f32.mrf.mxu0
        %1661 = vmatprep.mubr.f32.mxu0 %v1342
        %1662 = vmatmul.mubr.f32.gmra.mxu0 %v1525
        %v1663 = vpop.f32.mrf.mxu0
        %v1664 = vadd.f32 %v1571, %v1663
        %v1665 = vpop.f32.mrf.mxu0
        %1666 = vmatprep.mubr.f32.mxu0 %v1343
        %1667 = vmatmul.mubr.f32.gmra.mxu0 %v1526
        %v1668 = vpop.f32.mrf.mxu0
        %v1669 = vadd.f32 %v1571, %v1668
        %v1670 = vpop.f32.mrf.mxu0
        %1671 = vmatprep.mubr.f32.mxu0 %v1344
        %1672 = vmatmul.mubr.f32.gmra.mxu0 %v1527
        %v1673 = vpop.f32.mrf.mxu0
        %v1674 = vadd.f32 %v1571, %v1673
        %v1675 = vpop.f32.mrf.mxu0
        %1676 = vmatprep.mubr.f32.mxu0 %v1345
        %1677 = vmatmul.mubr.f32.gmra.mxu0 %v1528
        %v1678 = vpop.f32.mrf.mxu0
        %v1679 = vadd.f32 %v1571, %v1678
        %v1680 = vpop.f32.mrf.mxu0
        %1681 = vmatprep.mubr.f32.mxu0 %v1346
        %1682 = vmatmul.mubr.f32.gmra.mxu0 %v1529
        %v1683 = vpop.f32.mrf.mxu0
        %v1684 = vadd.f32 %v1571, %v1683
        %v1685 = vpop.f32.mrf.mxu0
        %1686 = vmatprep.mubr.f32.mxu0 %v1347
        %1687 = vmatmul.mubr.f32.gmra.mxu0 %v1530
        %v1688 = vpop.f32.mrf.mxu0
        %v1689 = vadd.f32 %v1571, %v1688
        %v1690 = vpop.f32.mrf.mxu0
        %1691 = vmatprep.mubr.f32.mxu0 %v1348
        %1692 = vmatmul.mubr.f32.gmra.mxu0 %v1531
        %v1693 = vpop.f32.mrf.mxu0
        %v1694 = vadd.f32 %v1571, %v1693
        %v1695 = vpop.f32.mrf.mxu0
        %1696 = vmatprep.mubr.f32.mxu0 %v1349
        %1697 = vmatmul.mubr.f32.gmra.mxu0 %v1532
        %v1698 = vpop.f32.mrf.mxu0
        %v1699 = vadd.f32 %v1571, %v1698
        %v1700 = vpop.f32.mrf.mxu0
        %1701 = vmatprep.mubr.f32.mxu0 %v1350
        %1702 = vmatmul.mubr.f32.gmra.mxu0 %v1533
        %v1703 = vpop.f32.mrf.mxu0
        %v1704 = vadd.f32 %v1571, %v1703
        %v1705 = vpop.f32.mrf.mxu0
        %1706 = vmatprep.mubr.f32.mxu0 %v1351
        %1707 = vmatmul.mubr.f32.gmra.mxu0 %v1534
        %v1708 = vpop.f32.mrf.mxu0
        %v1709 = vadd.f32 %v1571, %v1708
        %v1710 = vpop.f32.mrf.mxu0
        %1711 = vmatprep.mubr.f32.mxu0 %v1352
        %1712 = vmatmul.mubr.f32.gmra.mxu0 %v1535
        %v1713 = vpop.f32.mrf.mxu0
        %v1714 = vadd.f32 %v1571, %v1713
        %v1715 = vpop.f32.mrf.mxu0
        %1716 = vdwg.mxu0
        %v1717 = vmax.f32 %v1639, 0.0
        %v1718 = vmax.f32 %v1644, 0.0
        %v1719 = vmax.f32 %v1649, 0.0
        %v1720 = vmax.f32 %v1654, 0.0
        %v1721 = vmax.f32 %v1659, 0.0
        %v1722 = vmax.f32 %v1664, 0.0
        %v1723 = vmax.f32 %v1669, 0.0
        %v1724 = vmax.f32 %v1674, 0.0
        %v1725 = vmax.f32 %v1679, 0.0
        %v1726 = vmax.f32 %v1684, 0.0
        %v1727 = vmax.f32 %v1689, 0.0
        %v1728 = vmax.f32 %v1694, 0.0
        %v1729 = vmax.f32 %v1699, 0.0
        %v1730 = vmax.f32 %v1704, 0.0
        %v1731 = vmax.f32 %v1709, 0.0
        %v1732 = vmax.f32 %v1714, 0.0
        %1733 = vst [vmem:[%s393] sm:$0xff] %v1717
        %1734 = vst [vmem:[%s393 + $0x8] sm:$0xff] %v1718
        %1735 = vst [vmem:[%s393 + $0x10] sm:$0xff] %v1719
        %1736 = vst [vmem:[%s393 + $0x18] sm:$0xff] %v1720
        %1737 = vst [vmem:[%s393 + $0x20] sm:$0xff] %v1721
        %1738 = vst [vmem:[%s393 + $0x28] sm:$0xff] %v1722
        %1739 = vst [vmem:[%s393 + $0x30] sm:$0xff] %v1723
        %1740 = vst [vmem:[%s393 + $0x38] sm:$0xff] %v1724
        %1741 = vst [vmem:[%s393 + $0x40] sm:$0xff] %v1725
        %1742 = vst [vmem:[%s393 + $0x48] sm:$0xff] %v1726
        %1743 = vst [vmem:[%s393 + $0x50] sm:$0xff] %v1727
        %1744 = vst [vmem:[%s393 + $0x58] sm:$0xff] %v1728
        %1745 = vst [vmem:[%s393 + $0x60] sm:$0xff] %v1729
        %1746 = vst [vmem:[%s393 + $0x68] sm:$0xff] %v1730
        %1747 = vst [vmem:[%s393 + $0x70] sm:$0xff] %v1731
        %1748 = vst [vmem:[%s393 + $0x78] sm:$0xff] %v1732
        %s1749 = smul.u32 16, %s23
        %p1750 = scmp.lt.s32.totalorder %s1749, 31
        %s1751 = scalar_select %p1750, %s1749, 31
        %s1752 = smul.addr %s1751, 8
        %s1753 = scalar_lea.vmem %s9, %s1752
        // Predicated region
        $region73: #{residual_fc_encoder.1} parent=55 // pred_check
          %p1754 = pneg %p235
        $region74: #{residual_fc_encoder.1} parent=55 // pred_check_branch
          %1756 = sbr.rel (%p1754) target = $region76
        $region75: #{residual_fc_encoder.1} parent=55 // pred_region
          %s1757 = smul.u32 16, %s23
        $region76: #{residual_fc_encoder.1} parent=55 // pred_fallthru
          _
      $region56: #{residual_fc_encoder.1} parent=5 // pred_fallthru
        _
      %p1758 = scmp.le.s32.totalorder 2, %s18
      // Predicated region
      $region77: #{residual_fc_encoder.1} parent=5 // pred_check
        %p1759 = pneg %p1758
      $region78: #{residual_fc_encoder.1} parent=5 // pred_check_branch
        %1761 = sbr.rel (%p1759) target = $region80
      $region79: #{residual_fc_encoder.1} parent=5 // pred_region
        %s1762 = ssub.s32 %s18, 2
        // Predicated region
        $region81: #{residual_fc_encoder.1} parent=79 // pred_check
          %p1763 = pneg %p241
        $region82: #{residual_fc_encoder.1} parent=79 // pred_check_branch
          %1765 = sbr.rel (%p1763) target = $region84
        $region83: #{residual_fc_encoder.1} parent=79 // pred_region
          %s1766 = smul.u32 16, %s24
          %p1767 = scmp.lt.s32.totalorder %s1766, 31
          %s1768 = scalar_select %p1767, %s1766, 31
          %s1769 = smul.addr %s1768, 8
          %s1770 = scalar_lea.vmem %s9, %s1769
        $region84: #{residual_fc_encoder.1} parent=79 // pred_fallthru
          _
      $region80: #{residual_fc_encoder.1} parent=5 // pred_fallthru
        _
    $region6: #{residual_fc_encoder.1} parent=1 // loop_footer
      %s22 = sadd.s32 1, %s18
    $region7: #{residual_fc_encoder.1} parent=1 // loop_footer_branch
      %17 = sbr.rel target = $region3
    $region8: #{residual_fc_encoder.1} parent=1 // loop_exit
      _
    %1771 = vsyncpa [#allocation3], 1
    %s1772 = scalar_lea.sflag [#allocation3], 1
    %1773 = vsyncpa %s1772, 1
    %1774 = vsyncpa [#allocation5], 1
    %1775 = vsyncpa [#allocation8], 1

</llo_original>
